<compile_context>
chip_gen: v5e
topology: v5e:2x2
jax: 0.10.0
libtpu: 0.0.40
codegen_flags: <defaults>
</compile_context>

<pallas_src>
import jax
import jax.numpy as jnp
from jax.experimental import pallas as pl
from jax.experimental.pallas import tpu as pltpu


def _round_up(x, m):
    return (x + m - 1) // m * m


def _mxu_align():
    """256-aligned N/K fills the 2x256x256 MXU on v6e/v7x; 128 is optimal elsewhere."""
    try:
        kind = jax.devices()[0].device_kind.lower()
    except Exception:
        return 128
    if "v6" in kind or "v7" in kind:
        return 256
    return 128


def _vmem_capacity_bytes():
    try:
        return int(pltpu.get_tpu_info().vmem_capacity_bytes)
    except Exception:
        return 64 << 20  # conservative (v7x per-core capacity)


def _vmem_need(tl1, hp, l2p, out_lanes):
    """Budget assuming the default double-buffering of every pipelined operand."""
    return (
        2 * tl1 * hp * 2            # x1 tile, bf16
        + 2 * hp * hp * 2           # W_r block, bf16 (streamed over the R grid axis)
        + 2 * hp * l2p * 2          # x2^T, bf16 (constant index_map, still 2 buffers)
        + 2 * tl1 * out_lanes * 4   # pooled output slab, f32
        + tl1 * (hp * 6 + l2p * 4)  # intermediates: xw f32 + xw bf16 + s f32
    )


# ----------------------------------------------------------------------------
# Pallas kernel: fused pairwise bilinear scores + static-slice segment max-pool
# ----------------------------------------------------------------------------
def _make_bilinear_pool_kernel(boundaries, out_lanes):
    """Kernel factory closing over the static segment boundaries.

    Grid = (R, n_tiles), both "parallel".  Per grid point (r, t):
      x1_ref  : (TL1, Hp)          bf16 VMEM   question-token tile t
      w_ref   : (1, Hp, Hp)        bf16 VMEM   bilinear matrix of relation r (streamed)
      x2t_ref : (Hp, L2p)          bf16 VMEM   schema tokens, pre-transposed (resident)
      out_ref : (1, TL1, out_lanes) f32 VMEM   pooled scores, lane-dense (bias added later)
    """
    seg_pairs = tuple(zip(boundaries, boundaries[1:]))
    n_items = len(seg_pairs)
    pad_lanes = out_lanes - n_items

    def kernel(x1_ref, w_ref, x2t_ref, out_ref):
        # xw = x1_tile @ W_r   (TL1, Hp) f32 accumulation on the MXU.
        xw = jnp.dot(x1_ref[...], w_ref[0], preferred_element_type=jnp.float32)
        # s = (x1 W_r) @ x2^T  (TL1, L2p); xw rounded to bf16 for the MXU (documented trade).
        s = jnp.dot(xw.astype(jnp.bfloat16), x2t_ref[...],
                    preferred_element_type=jnp.float32)
        # Static per-segment slices -> narrow XLU lane-reduces, no masking work.
        cols = [jnp.max(s[:, lo:hi], axis=1, keepdims=True) for lo, hi in seg_pairs]
        if pad_lanes:
            cols.append(jnp.zeros((s.shape[0], pad_lanes), jnp.float32))
        # Single full-width (lane-dense) store.
        out_ref[0] = jnp.concatenate(cols, axis=1)

    return kernel


def bilinear_pooled_scores(x1, x2, W, boundaries, *, force_kernel=False):
    """Pooled bilinear scores, (R, L1, n_items) float32 (bias NOT included).

    `boundaries` must be a static Python sequence of strictly increasing ints (token-segment
    offsets into x2's rows), exactly as in the torch module's boundary lists.
    """
    assert isinstance(boundaries, (list, tuple)), "boundaries must be static Python ints"
    boundaries = [int(b) for b in boundaries]
    L1, H = x1.shape
    L2, H2 = x2.shape
    R = W.shape[0]
    assert H == H2 and W.shape[1:] == (H, H)
    n_items = len(boundaries) - 1
    assert n_items >= 1
    assert boundaries[0] >= 0 and boundaries[-1] <= L2
    # Empty segments would pool a sentinel / garbage into the argmax: reject up front.
    assert all(b1 > b0 for b0, b1 in zip(boundaries, boundaries[1:])), \
        "segment boundaries must be strictly increasing"

    # Tiny-problem dispatch: at demo-like sizes the MXU/lane padding inflates FLOPs 10-16x
    # and the kernel is pure launch/DMA overhead — the plain XLA path wins.
    if not force_kernel and (L1 < 32 or H < 64 or L2 < 64):
        return _pooled_scores_ref(x1, x2, W, boundaries)

    align = _mxu_align()                    # 256 on v6e/v7x, 128 otherwise
    Hp = _round_up(H, align)
    L2p = _round_up(L2, align)
    OUT_LANES = _round_up(n_items, 128)     # lane-dense pooled output

    vmem_cap = (_vmem_capacity_bytes() * 3) // 4   # ~48 MiB on v7x, ~96 MiB on v5e/v6e
    TL1 = max(128, min(512, _round_up(L1, 128)))
    while TL1 > 128 and _vmem_need(TL1, Hp, L2p, OUT_LANES) > vmem_cap:
        TL1 -= 128
    L1p = _round_up(L1, TL1)
    n_tiles = L1p // TL1

    f32 = jnp.float32
    # Zero padding is exact for both contractions; padded L1 rows are sliced off at the end.
    x1p = jnp.pad(x1.astype(f32), ((0, L1p - L1), (0, Hp - H))).astype(jnp.bfloat16)
    x2tp = jnp.pad(x2.astype(f32), ((0, L2p - L2), (0, Hp - H))).T.astype(jnp.bfloat16)
    wp = jnp.pad(W.astype(f32), ((0, 0), (0, Hp - H), (0, Hp - H))).astype(jnp.bfloat16)

    vmem_need = _vmem_need(TL1, Hp, L2p, OUT_LANES)
    vmem_limit = int(min(max(vmem_need * 5 // 4, 4 << 20), vmem_cap))

    kernel = _make_bilinear_pool_kernel(tuple(boundaries), OUT_LANES)
    pooled = pl.pallas_call(
        kernel,
        out_shape=jax.ShapeDtypeStruct((R, L1p, OUT_LANES), jnp.float32),
        grid=(R, n_tiles),
        in_specs=[
            pl.BlockSpec((TL1, Hp), lambda r, t: (t, 0)),        # x1 tile
            pl.BlockSpec((1, Hp, Hp), lambda r, t: (r, 0, 0)),   # W_r (streamed over grid)
            pl.BlockSpec((Hp, L2p), lambda r, t: (0, 0)),        # x2^T (resident)
        ],
        out_specs=pl.BlockSpec((1, TL1, OUT_LANES), lambda r, t: (r, t, 0)),
        compiler_params=pltpu.CompilerParams(
            # R outermost + parallel: >=2 parallel steps even for single-tile L1 -> both
            # v7x TensorCores get work; free on v5e/v6e (1 TC).
            dimension_semantics=("parallel", "parallel"),
            vmem_limit_bytes=vmem_limit,
        ),
    )(x1p, wp, x2tp)
    return pooled[:, :L1, :n_items]                              # (R, L1, n_items)


# ----------------------------------------------------------------------------
# Glue: discrete normalization, symmetric relations, reference
# ----------------------------------------------------------------------------
def _pooled_scores_ref(x1, x2, W, boundaries):
    """Pure-JAX f32 reference (also the dispatch target for tiny problem sizes)."""
    s = jnp.einsum('ih,rhk,jk->rij', x1, W, x2)
    segs = [jnp.max(s[:, :, lo:hi], axis=2, keepdims=True)
            for lo, hi in zip(boundaries, boundaries[1:])]
    return jnp.concatenate(segs, axis=2)                         # (R, L1, n_items)


def argmax_onehot(x, axis):
    """Eval-time discrete relation: one-hot of argmax along `axis` (torch `argmax` helper)."""
    idx = jnp.argmax(x, axis=axis)
    return jax.nn.one_hot(idx, x.shape[axis], axis=axis, dtype=x.dtype)


def get_symmetric_relation(x1, x2, boundaries, W, b):
    """norm_relation=True, discrete_relation=True, eval mode (argmax one-hot, dim=2)."""
    pooled = bilinear_pooled_scores(x1, x2, W, boundaries)       # (R, L1, n_items)
    pooled = pooled + b[:, None, None]       # max(s + b_r) == max(s) + b_r (b const per r)
    scores = jnp.transpose(pooled, (1, 2, 0))                    # tiny: (L1, n_items, R)
    r1 = argmax_onehot(scores, axis=2)                           # (L1, n_items, R)
    r2 = argmax_onehot(jnp.transpose(scores, (1, 0, 2)), axis=2) # (n_items, L1, R)
    return r1, r2


def make_bilinear_params(key, hidden_size, num_latent_relations):
    """Deterministic init. include_id=True -> last relation is the identity (dot product)."""
    kw, kb = jax.random.split(key)
    W = 0.05 * jax.random.normal(kw, (num_latent_relations, hidden_size, hidden_size),
                                 dtype=jnp.float32)
    b = 0.05 * jax.random.normal(kb, (num_latent_relations,), dtype=jnp.float32)
    W = W.at[-1].set(jnp.eye(hidden_size, dtype=jnp.float32))    # identity relation
    b = b.at[-1].set(0.0)
    return W, b


def bilinear_linking_forward(q_enc, c_enc, t_enc, c_boundaries, t_boundaries, params):
    """Mirrors BilinearLinking.forward_unbatched (latent-relation part)."""
    qc_relation, cq_relation = get_symmetric_relation(
        q_enc, c_enc, c_boundaries, params["W_qc"], params["b_qc"])
    qt_relation, tq_relation = get_symmetric_relation(
        q_enc, t_enc, t_boundaries, params["W_qt"], params["b_qt"])
    return {
        "qc_relation": qc_relation,   # (q_len, n_cols, R)
        "cq_relation": cq_relation,   # (n_cols, q_len, R)
        "qt_relation": qt_relation,   # (q_len, n_tabs, R)
        "tq_relation": tq_relation,   # (n_tabs, q_len, R)
    }


# ----------------------------------------------------------------------------
# Main
# ----------------------------------------------------------------------------
if __name__ == "__main__":
    key = jax.random.PRNGKey(0)
    (k_emb, k_q, k_c, k_t, k_qc, k_qt,
     k_k1, k_k2, k_k3) = jax.random.split(key, 9)

    # ---- kernel-regime correctness check (moderate sizes actually exercise the Pallas path)
    kH, kL1, kL2, kR = 200, 150, 330, 4
    k_bnd = [0, 40, 95, 150, 210, 260, 330]
    kx1 = jax.random.normal(k_k1, (kL1, kH), dtype=jnp.float32) / jnp.sqrt(kH)
    kx2 = jax.random.normal(k_k2, (kL2, kH), dtype=jnp.float32) / jnp.sqrt(kH)
    kW = jax.random.normal(k_k3, (kR, kH, kH), dtype=jnp.float32)
    pooled_k = jax.block_until_ready(
        bilinear_pooled_scores(kx1, kx2, kW, k_bnd, force_kernel=True))
    pooled_ref = _pooled_scores_ref(kx1, kx2, kW, k_bnd)
    rel_err = jnp.max(jnp.abs(pooled_k - pooled_ref)) / (jnp.max(jnp.abs(pooled_ref)) + 1e-6)
    assert pooled_k.shape == (kR, kL1, len(k_bnd) - 1)
    assert float(rel_err) < 5e-2, float(rel_err)     # bf16 MXU double-rounding tolerance

    # ---- small module-consistent demo (dispatches to the XLA reference path by design)
    hidden_size = 32          # hidden_size == word_emb_size for the synthetic encoders
    num_latent_relations = 4
    vocab_size = 50
    q_len = 8                 # question tokens
    n_col_tokens = 12         # column-name tokens, 4 columns of 3 tokens each
    n_tab_tokens = 6          # table-name tokens, 2 tables of 3 tokens each
    c_boundaries = [0, 3, 6, 9, 12]
    t_boundaries = [0, 3, 6]

    # shared-en-emb encoder: embedding lookup (glue).
    emb_table = 0.1 * jax.random.normal(k_emb, (vocab_size, hidden_size), dtype=jnp.float32)
    q_tokens = jax.random.randint(k_q, (q_len,), 0, vocab_size)
    c_tokens = jax.random.randint(k_c, (n_col_tokens,), 0, vocab_size)
    t_tokens = jax.random.randint(k_t, (n_tab_tokens,), 0, vocab_size)
    q_enc = emb_table[q_tokens]          # (q_len, hidden)
    c_enc = emb_table[c_tokens]          # (n_col_tokens, hidden)
    t_enc = emb_table[t_tokens]          # (n_tab_tokens, hidden)

    # Bilinear score parameters for the symmetric relations ('qc', 'qt').
    W_qc, b_qc = make_bilinear_params(k_qc, hidden_size, num_latent_relations)
    W_qt, b_qt = make_bilinear_params(k_qt, hidden_size, num_latent_relations)
    params = {"W_qc": W_qc, "b_qc": b_qc, "W_qt": W_qt, "b_qt": b_qt}

    # Sanity on the dispatch path (tiny sizes -> XLA einsum path).
    pooled_qc = jax.block_until_ready(bilinear_pooled_scores(q_enc, c_enc, W_qc, c_boundaries))
    assert bool(jnp.allclose(pooled_qc, _pooled_scores_ref(q_enc, c_enc, W_qc, c_boundaries),
                             rtol=5e-2, atol=5e-3))

    out = bilinear_linking_forward(q_enc, c_enc, t_enc, c_boundaries, t_boundaries, params)
    out = jax.tree_util.tree_map(jax.block_until_ready, out)

    # Sanity: shapes and one-hot property of the discrete relations.
    assert out["qc_relation"].shape == (q_len, len(c_boundaries) - 1, num_latent_relations)
    assert out["cq_relation"].shape == (len(c_boundaries) - 1, q_len, num_latent_relations)
    assert out["qt_relation"].shape == (q_len, len(t_boundaries) - 1, num_latent_relations)
    assert out["tq_relation"].shape == (len(t_boundaries) - 1, q_len, num_latent_relations)
    for v in out.values():
        assert bool(jnp.all(jnp.sum(v, axis=-1) == 1.0))

    print("KERNEL_OK")
</pallas_src>

<mosaic_0001>
module attributes {stable_mosaic.version = 11 : i64} {
  func.func @kernel(%arg0: i32, %arg1: i32, %arg2: memref<256x256xbf16, #tpu.memory_space<vmem>>, %arg3: memref<1x256x256xbf16, #tpu.memory_space<vmem>>, %arg4: memref<256x384xbf16, #tpu.memory_space<vmem>>, %arg5: memref<1x256x128xf32, #tpu.memory_space<vmem>>) attributes {dimension_semantics = [#tpu.dimension_semantics<parallel>, #tpu.dimension_semantics<parallel>], iteration_bounds = array<i64: 4, 1>, scalar_prefetch = 0 : i64, scratch_operands = 0 : i64, tpu.core_type = #tpu.core_type<tc>, window_params = [{transform_indices = @transform_0, window_bounds = array<i64: 256, 256>}, {transform_indices = @transform_1, window_bounds = array<i64: 1, 256, 256>}, {pipeline_mode = #tpu.pipeline_mode<synchronous>, transform_indices = @transform_2, window_bounds = array<i64: 256, 384>}, {transform_indices = @transform_3, window_bounds = array<i64: 1, 256, 128>}]} {
    %c0 = arith.constant 0 : index
    %c0_0 = arith.constant 0 : index
    %0 = vector.load %arg2[%c0, %c0_0] : memref<256x256xbf16, #tpu.memory_space<vmem>>, vector<256x256xbf16>
    %c0_1 = arith.constant 0 : index
    %c0_2 = arith.constant 0 : index
    %c0_3 = arith.constant 0 : index
    %1 = vector.load %arg3[%c0_1, %c0_2, %c0_3] : memref<1x256x256xbf16, #tpu.memory_space<vmem>>, vector<1x256x256xbf16>
    %2 = vector.shape_cast %1 : vector<1x256x256xbf16> to vector<256x256xbf16>
    %cst = arith.constant dense<0.000000e+00> : vector<256x256xf32>
    %3 = tpu.matmul %0, %2, %cst {dimension_numbers = #tpu.dot_dimension_numbers<[1], [0], [0], [1], [0, 0, 1, 1], [], []>} : vector<256x256xbf16>, vector<256x256xbf16>, vector<256x256xf32> -> vector<256x256xf32>
    %4 = arith.truncf %3 : vector<256x256xf32> to vector<256x256xbf16>
    %c0_4 = arith.constant 0 : index
    %c0_5 = arith.constant 0 : index
    %5 = vector.load %arg4[%c0_4, %c0_5] : memref<256x384xbf16, #tpu.memory_space<vmem>>, vector<256x384xbf16>
    %cst_6 = arith.constant dense<0.000000e+00> : vector<256x384xf32>
    %6 = tpu.matmul %4, %5, %cst_6 {dimension_numbers = #tpu.dot_dimension_numbers<[1], [0], [0], [1], [0, 0, 1, 1], [], []>} : vector<256x256xbf16>, vector<256x384xbf16>, vector<256x384xf32> -> vector<256x384xf32>
    %7 = vector.extract_strided_slice %6 {offsets = [0, 0], sizes = [256, 40], strides = [1, 1]} : vector<256x384xf32> to vector<256x40xf32>
    %cst_7 = arith.constant dense<0xFF800000> : vector<256xf32>
    %8 = vector.multi_reduction <maximumf>, %7, %cst_7 [1] : vector<256x40xf32> to vector<256xf32>
    %9 = vector.shape_cast %8 : vector<256xf32> to vector<256x1xf32>
    %10 = vector.extract_strided_slice %6 {offsets = [0, 40], sizes = [256, 55], strides = [1, 1]} : vector<256x384xf32> to vector<256x55xf32>
    %cst_8 = arith.constant dense<0xFF800000> : vector<256xf32>
    %11 = vector.multi_reduction <maximumf>, %10, %cst_8 [1] : vector<256x55xf32> to vector<256xf32>
    %12 = vector.shape_cast %11 : vector<256xf32> to vector<256x1xf32>
    %13 = vector.extract_strided_slice %6 {offsets = [0, 95], sizes = [256, 55], strides = [1, 1]} : vector<256x384xf32> to vector<256x55xf32>
    %cst_9 = arith.constant dense<0xFF800000> : vector<256xf32>
    %14 = vector.multi_reduction <maximumf>, %13, %cst_9 [1] : vector<256x55xf32> to vector<256xf32>
    %15 = vector.shape_cast %14 : vector<256xf32> to vector<256x1xf32>
    %16 = vector.extract_strided_slice %6 {offsets = [0, 150], sizes = [256, 60], strides = [1, 1]} : vector<256x384xf32> to vector<256x60xf32>
    %cst_10 = arith.constant dense<0xFF800000> : vector<256xf32>
    %17 = vector.multi_reduction <maximumf>, %16, %cst_10 [1] : vector<256x60xf32> to vector<256xf32>
    %18 = vector.shape_cast %17 : vector<256xf32> to vector<256x1xf32>
    %19 = vector.extract_strided_slice %6 {offsets = [0, 210], sizes = [256, 50], strides = [1, 1]} : vector<256x384xf32> to vector<256x50xf32>
    %cst_11 = arith.constant dense<0xFF800000> : vector<256xf32>
    %20 = vector.multi_reduction <maximumf>, %19, %cst_11 [1] : vector<256x50xf32> to vector<256xf32>
    %21 = vector.shape_cast %20 : vector<256xf32> to vector<256x1xf32>
    %22 = vector.extract_strided_slice %6 {offsets = [0, 260], sizes = [256, 70], strides = [1, 1]} : vector<256x384xf32> to vector<256x70xf32>
    %cst_12 = arith.constant dense<0xFF800000> : vector<256xf32>
    %23 = vector.multi_reduction <maximumf>, %22, %cst_12 [1] : vector<256x70xf32> to vector<256xf32>
    %24 = vector.shape_cast %23 : vector<256xf32> to vector<256x1xf32>
    %cst_13 = arith.constant 0.000000e+00 : f32
    %25 = vector.broadcast %cst_13 : f32 to vector<256x122xf32>
    %26 = tpu.concatenate %9, %12, %15, %18, %21, %24, %25 in 1 : vector<256x1xf32>, vector<256x1xf32>, vector<256x1xf32>, vector<256x1xf32>, vector<256x1xf32>, vector<256x1xf32>, vector<256x122xf32> -> vector<256x128xf32>
    %c0_14 = arith.constant 0 : index
    %c0_15 = arith.constant 0 : index
    %c0_16 = arith.constant 0 : index
    %27 = vector.load %arg5[%c0_14, %c0_15, %c0_16] : memref<1x256x128xf32, #tpu.memory_space<vmem>>, vector<1x256x128xf32>
    %28 = vector.shape_cast %27 : vector<1x256x128xf32> to vector<256x128xf32>
    %29 = vector.shape_cast %26 : vector<256x128xf32> to vector<1x256x128xf32>
    tpu.vector_store %arg5[%c0_14, %c0_15, %c0_16], %29 {strides = array<i32>} : memref<1x256x128xf32, #tpu.memory_space<vmem>>, vector<1x256x128xf32>,
    return
  }
  func.func @transform_0(%arg0: i32, %arg1: i32) -> (i32, i32) {
    %c0_i32 = arith.constant 0 : i32
    %c0_i32_0 = arith.constant 0 : i32
    return %arg1, %c0_i32 : i32, i32
  }
  func.func @transform_1(%arg0: i32, %arg1: i32) -> (i32, i32, i32) {
    %c0_i32 = arith.constant 0 : i32
    %c0_i32_0 = arith.constant 0 : i32
    %c0_i32_1 = arith.constant 0 : i32
    return %arg0, %c0_i32, %c0_i32_0 : i32, i32, i32
  }
  func.func @transform_2(%arg0: i32, %arg1: i32) -> (i32, i32) {
    %c0_i32 = arith.constant 0 : i32
    %c0_i32_0 = arith.constant 0 : i32
    %c0_i32_1 = arith.constant 0 : i32
    return %c0_i32, %c0_i32_0 : i32, i32
  }
  func.func @transform_3(%arg0: i32, %arg1: i32) -> (i32, i32, i32) {
    %c0_i32 = arith.constant 0 : i32
    %c0_i32_0 = arith.constant 0 : i32
    return %arg0, %arg1, %c0_i32 : i32, i32, i32
  }
}

</mosaic_0001>

<llo_original>
// kernel: tpu_custom_call.1
$region0: #{tpu_custom_call.1}
  #allocation0 [shape = 'u32[]', space=smem, size = 0x4, offset = 0x4, fixed_abs, tag = 'smem constant byte address 0x4 - core index']
  #allocation1 [shape = 'u32[72,128]{1,0:T(1,128)}', space=vmem, size = 0x9000, scoped, tag = 'internal scratch']
  %s0 = inlined_call_operand.hbm [shape: bf16[256,256], index: 0, kind: input, shape index: {}]
  %s1 = inlined_call_operand.hbm [shape: bf16[4,256,256], index: 1, kind: input, shape index: {}]
  %s2 = inlined_call_operand.hbm [shape: bf16[256,384], index: 2, kind: input, shape index: {}]
  %s3 = inlined_call_operand.hbm [shape: f32[4,256,128], index: 3, kind: output, shape index: {}]
  %s4 = sld [smem:[#allocation0]]
  $region57: #{tpu_custom_call.1} parent=0
    _
  %s6 = ssub.s32 1, %s4
  %s7 = scalar_select 0, %s6, %s4
  $region1: #{tpu_custom_call.1} parent=0
    #allocation2 [shape = 'u8[131072]{0}', space=vmem, size = 0x20000, scoped, tag = 'input window, operand 0, single buffered']
    #allocation3 [shape = 's32[2]{0}', space=sflag, size = 0x8, scoped, tag = 'scoped memory for tpu_custom_call.1']
    #allocation4 [shape = 's32[2]{0}', space=sflag, size = 0x8, scoped, tag = 'scoped memory for tpu_custom_call.1']
    #allocation5 [shape = 'u8[262144]{0}', space=vmem, size = 0x40000, scoped, tag = 'input window, operand 1']
    #allocation6 [shape = 's32[2]{0}', space=sflag, size = 0x8, scoped, tag = 'scoped memory for tpu_custom_call.1']
    #allocation7 [shape = 'u8[196608]{0}', space=vmem, size = 0x30000, scoped, tag = 'input window, operand 2, single buffered']
    #allocation8 [shape = 'u8[262144]{0}', space=vmem, size = 0x40000, scoped, tag = 'output window, operand 0']
    %8 = vsyncpa [#allocation3], 0
    %9 = vsyncpa [#allocation6], 0
    %s10 = scalar_lea.sflag [#allocation6], 1
    %11 = vsyncpa %s10, 0
    %12 = vsyncpa [#allocation4], 0
    %s13 = scalar_lea.sflag [#allocation4], 1
    %14 = vsyncpa %s13, 0
    loop: start=0, step=1, limit=6
    $region2: #{tpu_custom_call.1} parent=1 // loop_pre_header
      _
    $region3: #{tpu_custom_call.1} parent=1 // loop_header
      %s16 = sphi 0, %s20
      %p17 = scmp.ge.s32.totalorder %s16, 6
      %s23 = sphi 0, %s35
      %s24 = sphi 0, %s31
      %s25 = sphi 0, %s23
      %s26 = sphi 0, %s24
      %s27 = sphi 0, %s25
      %s28 = sphi 0, %s26
      %s38 = sphi 0, %s40
      %s41 = sphi 0, %s38
      %s42 = sphi 0, %s41
      %s58 = sphi 0, %s42
      %s64 = sphi 0, %s66
      %s67 = sphi 0, %s64
      %s68 = sphi 0, %s67
      %s84 = sphi 0, %s68
      %s88 = sphi 0, %s88
      %s90 = sphi 0, %s88
      %s91 = sphi 0, %s90
      %s105 = sphi 0, %s91
      %s113 = sphi 0, %s115
      %s116 = sphi 0, %s113
      %s117 = sphi 0, %s116
      %s133 = sphi 0, %s117
    $region4: #{tpu_custom_call.1} parent=1 // loop_header_branch
      %19 = sbr.rel (%p17) target = $region8
    $region5: #{tpu_custom_call.1} parent=1 // loop_body
      %s21 = ssub.s32 %s16, 1
      %s22 = ssub.s32 %s16, 2
      %s29 = sadd.s32 1, %s24
      %p30 = scmp.ge.s32.totalorder %s29, 1
      %s31 = scalar_select %p30, 0, %s29
      %s32 = sadd.s32 1, %s23
      %s33 = scalar_select %p30, %s32, %s23
      %p34 = scmp.ge.s32.totalorder %s33, 4
      %s35 = scalar_select %p34, 0, %s33
      %s36 = ssub.s32 %s24, %s31
      %p37 = scmp.eq.s32.totalorder %s36, 0
      %s39 = sadd.s32 %s38, 1
      %s40 = scalar_select %p37, %s38, %s39
      %p43 = pneg %p37
      %p44 = scmp.eq.s32.totalorder %s16, 3
      %p45 = por %p43, %p44
      %p46 = scmp.ne.s32.totalorder %s38, %s41
      %p47 = scmp.eq.s32.totalorder %s16, 0
      %p48 = por %p46, %p47
      %p49 = scmp.ne.s32.totalorder %s38, %s41
      %p50 = scmp.eq.s32.totalorder %s21, 3
      %p51 = por %p49, %p50
      %p52 = scmp.ne.s32.totalorder %s41, %s42
      %p53 = scmp.eq.s32.totalorder %s21, 0
      %p54 = por %p52, %p53
      %p55 = scmp.ne.s32.totalorder %s41, %s42
      %p56 = scmp.eq.s32.totalorder %s22, 3
      %p57 = por %p55, %p56
      %p59 = scmp.ne.s32.totalorder %s42, %s58
      %p60 = scmp.eq.s32.totalorder %s22, 0
      %p61 = por %p59, %p60
      %s62 = ssub.s32 %s23, %s35
      %p63 = scmp.eq.s32.totalorder %s62, 0
      %s65 = sadd.s32 %s64, 1
      %s66 = scalar_select %p63, %s64, %s65
      %p69 = pneg %p63
      %p70 = scmp.eq.s32.totalorder %s16, 3
      %p71 = por %p69, %p70
      %p72 = scmp.ne.s32.totalorder %s64, %s67
      %p73 = scmp.eq.s32.totalorder %s16, 0
      %p74 = por %p72, %p73
      %p75 = scmp.ne.s32.totalorder %s64, %s67
      %p76 = scmp.eq.s32.totalorder %s21, 3
      %p77 = por %p75, %p76
      %p78 = scmp.ne.s32.totalorder %s67, %s68
      %p79 = scmp.eq.s32.totalorder %s21, 0
      %p80 = por %p78, %p79
      %p81 = scmp.ne.s32.totalorder %s67, %s68
      %p82 = scmp.eq.s32.totalorder %s22, 3
      %p83 = por %p81, %p82
      %p85 = scmp.ne.s32.totalorder %s68, %s84
      %p86 = scmp.eq.s32.totalorder %s22, 0
      %p87 = por %p85, %p86
      %s89 = sadd.s32 %s88, 1
      %p92 = scmp.eq.s32.totalorder %s16, 3
      %p93 = scmp.ne.s32.totalorder %s88, %s90
      %p94 = scmp.eq.s32.totalorder %s16, 0
      %p95 = por %p93, %p94
      %p96 = scmp.ne.s32.totalorder %s88, %s90
      %p97 = scmp.eq.s32.totalorder %s21, 3
      %p98 = por %p96, %p97
      %p99 = scmp.ne.s32.totalorder %s90, %s91
      %p100 = scmp.eq.s32.totalorder %s21, 0
      %p101 = por %p99, %p100
      %p102 = scmp.ne.s32.totalorder %s90, %s91
      %p103 = scmp.eq.s32.totalorder %s22, 3
      %p104 = por %p102, %p103
      %p106 = scmp.ne.s32.totalorder %s91, %s105
      %p107 = scmp.eq.s32.totalorder %s22, 0
      %p108 = por %p106, %p107
      %s109 = ssub.s32 %s23, %s35
      %s110 = ssub.s32 %s24, %s31
      %s111 = sor.u32 %s109, %s110
      %p112 = scmp.eq.s32.totalorder %s111, 0
      %s114 = sadd.s32 %s113, 1
      %s115 = scalar_select %p112, %s113, %s114
      %p118 = pneg %p112
      %p119 = scmp.eq.s32.totalorder %s16, 3
      %p120 = por %p118, %p119
      %p121 = scmp.ne.s32.totalorder %s113, %s116
      %p122 = scmp.eq.s32.totalorder %s16, 0
      %p123 = por %p121, %p122
      %p124 = scmp.ne.s32.totalorder %s113, %s116
      %p125 = scmp.eq.s32.totalorder %s21, 3
      %p126 = por %p124, %p125
      %p127 = scmp.ne.s32.totalorder %s116, %s117
      %p128 = scmp.eq.s32.totalorder %s21, 0
      %p129 = por %p127, %p128
      %p130 = scmp.ne.s32.totalorder %s116, %s117
      %p131 = scmp.eq.s32.totalorder %s22, 3
      %p132 = por %p130, %p131
      %p134 = scmp.ne.s32.totalorder %s117, %s133
      %p135 = scmp.eq.s32.totalorder %s22, 0
      %p136 = por %p134, %p135
      %p137 = scmp.le.s32.totalorder 1, %s16
      %p138 = scmp.lt.s32.totalorder %s16, 5
      %p139 = pnand %p137, %p138
      %p140 = pneg %p139
      // Predicated region
      $region9: #{tpu_custom_call.1} parent=5 // pred_check
        _
      $region10: #{tpu_custom_call.1} parent=5 // pred_check_branch
        %142 = sbr.rel (%p139) target = $region12
      $region11: #{tpu_custom_call.1} parent=5 // pred_region
        %s143 = ssub.s32 %s16, 1
        // Predicated region
        $region13: #{tpu_custom_call.1} parent=11 // pred_check
          %p144 = pneg %p54
        $region14: #{tpu_custom_call.1} parent=11 // pred_check_branch
          %146 = sbr.rel (%p144) target = $region16
        $region15: #{tpu_custom_call.1} parent=11 // pred_region
          %s147 = smul.u32 32, %s26
          %149 = vsyncadd [#allocation3], 0
          %s150 = smul.addr %s147, 2
          %s151 = smul.addr %s150, 4
          %s152 = scalar_lea.hbm %s0, %s151
          %s153 = sshll.u32 %s152, 4
          %s154 = int_to_ptr.hbm [resolvable:$true] %s153
          %s155 = sshll.u32 [#allocation2], 4
          %s156 = int_to_ptr.vmem [resolvable:$true] %s155
          %161 = dma.hbm_to_vmem [thread:$0]  %s154, 4096, %s156, [#allocation3], 128, 128, 8
        $region16: #{tpu_custom_call.1} parent=11 // pred_fallthru
          _
        // Predicated region
        $region17: #{tpu_custom_call.1} parent=11 // pred_check
          %p162 = pneg %p101
        $region18: #{tpu_custom_call.1} parent=11 // pred_check_branch
          %164 = sbr.rel (%p162) target = $region20
        $region19: #{tpu_custom_call.1} parent=11 // pred_region
          %166 = vsyncadd [#allocation6], 0
          %s167 = sshll.u32 %s2, 4
          %s168 = int_to_ptr.hbm [resolvable:$true] %s167
          %s169 = sshll.u32 [#allocation7], 4
          %s170 = int_to_ptr.vmem [resolvable:$true] %s169
          %175 = dma.hbm_to_vmem [thread:$0]  %s168, 6144, %s170, [#allocation6], 192, 192, 12
        $region20: #{tpu_custom_call.1} parent=11 // pred_fallthru
          _
      $region12: #{tpu_custom_call.1} parent=5 // pred_fallthru
        _
      %p176 = scmp.lt.s32.totalorder %s16, 4
      // Predicated region
      $region21: #{tpu_custom_call.1} parent=5 // pred_check
        %p177 = pneg %p176
      $region22: #{tpu_custom_call.1} parent=5 // pred_check_branch
        %179 = sbr.rel (%p177) target = $region24
      $region23: #{tpu_custom_call.1} parent=5 // pred_region
        // Predicated region
        $region25: #{tpu_custom_call.1} parent=23 // pred_check
          %p180 = pneg %p74
        $region26: #{tpu_custom_call.1} parent=23 // pred_check_branch
          %182 = sbr.rel (%p180) target = $region28
        $region27: #{tpu_custom_call.1} parent=23 // pred_region
          %s183 = sand.u32 %s16, 1
          %s184 = scalar_lea.sflag [#allocation6], %s183
          %s185 = sand.u32 %s64, 1
          %s186 = smul.addr %s185, 256
          %s187 = scalar_lea.vmem [#allocation5], %s186
          %189 = vsyncadd %s184, 0
          %s190 = smul.addr %s23, 64
          %s191 = smul.addr %s190, 4
          %s192 = scalar_lea.hbm %s1, %s191
          %s193 = sshll.u32 %s192, 4
          %s194 = int_to_ptr.hbm [resolvable:$true] %s193
          %s195 = sshll.u32 %s187, 4
          %s196 = int_to_ptr.vmem [resolvable:$true] %s195
          %201 = dma.hbm_to_vmem [thread:$0]  %s194, 4096, %s196, %s184, 128, 128, 8
        $region28: #{tpu_custom_call.1} parent=23 // pred_fallthru
          _
      $region24: #{tpu_custom_call.1} parent=5 // pred_fallthru
        _
      %p202 = scmp.le.s32.totalorder 1, %s16
      %p203 = scmp.lt.s32.totalorder %s16, 5
      %p204 = pnand %p202, %p203
      %p205 = pneg %p204
      // Predicated region
      $region29: #{tpu_custom_call.1} parent=5 // pred_check
        _
      $region30: #{tpu_custom_call.1} parent=5 // pred_check_branch
        %207 = sbr.rel (%p204) target = $region32
      $region31: #{tpu_custom_call.1} parent=5 // pred_region
        %s208 = ssub.s32 %s16, 1
        // Predicated region
        $region33: #{tpu_custom_call.1} parent=31 // pred_check
          %p209 = pneg %p54
        $region34: #{tpu_custom_call.1} parent=31 // pred_check_branch
          %211 = sbr.rel (%p209) target = $region36
        $region35: #{tpu_custom_call.1} parent=31 // pred_region
          %213 = dma.done [#allocation3], 4096
        $region36: #{tpu_custom_call.1} parent=31 // pred_fallthru
          _
        %s214 = sand.u32 %s21, 1
        %s215 = scalar_lea.sflag [#allocation6], %s214
        %s216 = sand.u32 %s67, 1
        %s217 = smul.addr %s216, 256
        %s218 = scalar_lea.vmem [#allocation5], %s217
        // Predicated region
        $region37: #{tpu_custom_call.1} parent=31 // pred_check
          %p219 = pneg %p80
        $region38: #{tpu_custom_call.1} parent=31 // pred_check_branch
          %221 = sbr.rel (%p219) target = $region40
        $region39: #{tpu_custom_call.1} parent=31 // pred_region
          %223 = dma.done %s215, 4096
        $region40: #{tpu_custom_call.1} parent=31 // pred_fallthru
          _
        // Predicated region
        $region41: #{tpu_custom_call.1} parent=31 // pred_check
          %p224 = pneg %p101
        $region42: #{tpu_custom_call.1} parent=31 // pred_check_branch
          %226 = sbr.rel (%p224) target = $region44
        $region43: #{tpu_custom_call.1} parent=31 // pred_region
          %228 = dma.done [#allocation6], 6144
        $region44: #{tpu_custom_call.1} parent=31 // pred_fallthru
          _
        %p229 = pneg %p54
        %p230 = pneg %p51
        %s231 = sand.u32 %s21, 1
        %s232 = scalar_lea.sflag [#allocation6], %s231
        %s233 = sand.u32 %s67, 1
        %s234 = smul.addr %s233, 256
        %s235 = scalar_lea.vmem [#allocation5], %s234
        %p236 = pneg %p80
        %p237 = pneg %p77
        %p238 = pneg %p101
        %p239 = pneg %p98
        %p240 = pneg %p129
        %p241 = pneg %p126
        %s242 = sand.u32 %s116, 1
        %s243 = scalar_lea.sflag [#allocation4], %s242
        %s244 = sand.u32 %s116, 1
        %s245 = smul.addr %s244, 256
        %s246 = scalar_lea.vmem [#allocation8], %s245
        %s247 = smul.u32 32, %s26
        %s248 = smul.u32 32, %s26
        %v249 = vld [vmem:[#allocation2] sm:$0xff]
        %v250 = vld [vmem:[#allocation2 + $0x8] sm:$0xff]
        %v251 = vld [vmem:[#allocation2 + $0x10] sm:$0xff]
        %v252 = vld [vmem:[#allocation2 + $0x18] sm:$0xff]
        %v253 = vld [vmem:[#allocation2 + $0x20] sm:$0xff]
        %v254 = vld [vmem:[#allocation2 + $0x28] sm:$0xff]
        %v255 = vld [vmem:[#allocation2 + $0x30] sm:$0xff]
        %v256 = vld [vmem:[#allocation2 + $0x38] sm:$0xff]
        %v257 = vld [vmem:[#allocation2 + $0x40] sm:$0xff]
        %v258 = vld [vmem:[#allocation2 + $0x48] sm:$0xff]
        %v259 = vld [vmem:[#allocation2 + $0x50] sm:$0xff]
        %v260 = vld [vmem:[#allocation2 + $0x58] sm:$0xff]
        %v261 = vld [vmem:[#allocation2 + $0x60] sm:$0xff]
        %v262 = vld [vmem:[#allocation2 + $0x68] sm:$0xff]
        %v263 = vld [vmem:[#allocation2 + $0x70] sm:$0xff]
        %v264 = vld [vmem:[#allocation2 + $0x78] sm:$0xff]
        %v265 = vld [vmem:[#allocation2 + $0x80] sm:$0xff]
        %v266 = vld [vmem:[#allocation2 + $0x88] sm:$0xff]
        %v267 = vld [vmem:[#allocation2 + $0x90] sm:$0xff]
        %v268 = vld [vmem:[#allocation2 + $0x98] sm:$0xff]
        %v269 = vld [vmem:[#allocation2 + $0xa0] sm:$0xff]
        %v270 = vld [vmem:[#allocation2 + $0xa8] sm:$0xff]
        %v271 = vld [vmem:[#allocation2 + $0xb0] sm:$0xff]
        %v272 = vld [vmem:[#allocation2 + $0xb8] sm:$0xff]
        %v273 = vld [vmem:[#allocation2 + $0xc0] sm:$0xff]
        %v274 = vld [vmem:[#allocation2 + $0xc8] sm:$0xff]
        %v275 = vld [vmem:[#allocation2 + $0xd0] sm:$0xff]
        %v276 = vld [vmem:[#allocation2 + $0xd8] sm:$0xff]
        %v277 = vld [vmem:[#allocation2 + $0xe0] sm:$0xff]
        %v278 = vld [vmem:[#allocation2 + $0xe8] sm:$0xff]
        %v279 = vld [vmem:[#allocation2 + $0xf0] sm:$0xff]
        %v280 = vld [vmem:[#allocation2 + $0xf8] sm:$0xff]
        %v281 = vld [vmem:[%s218] sm:$0xff]
        %v282 = vld [vmem:[%s218 + $0x8] sm:$0xff]
        %v283 = vld [vmem:[%s218 + $0x10] sm:$0xff]
        %v284 = vld [vmem:[%s218 + $0x18] sm:$0xff]
        %v285 = vld [vmem:[%s218 + $0x20] sm:$0xff]
        %v286 = vld [vmem:[%s218 + $0x28] sm:$0xff]
        %v287 = vld [vmem:[%s218 + $0x30] sm:$0xff]
        %v288 = vld [vmem:[%s218 + $0x38] sm:$0xff]
        %v289 = vld [vmem:[%s218 + $0x40] sm:$0xff]
        %v290 = vld [vmem:[%s218 + $0x48] sm:$0xff]
        %v291 = vld [vmem:[%s218 + $0x50] sm:$0xff]
        %v292 = vld [vmem:[%s218 + $0x58] sm:$0xff]
        %v293 = vld [vmem:[%s218 + $0x60] sm:$0xff]
        %v294 = vld [vmem:[%s218 + $0x68] sm:$0xff]
        %v295 = vld [vmem:[%s218 + $0x70] sm:$0xff]
        %v296 = vld [vmem:[%s218 + $0x78] sm:$0xff]
        %v297 = vld [vmem:[%s218 + $0x80] sm:$0xff]
        %v298 = vld [vmem:[%s218 + $0x88] sm:$0xff]
        %v299 = vld [vmem:[%s218 + $0x90] sm:$0xff]
        %v300 = vld [vmem:[%s218 + $0x98] sm:$0xff]
        %v301 = vld [vmem:[%s218 + $0xa0] sm:$0xff]
        %v302 = vld [vmem:[%s218 + $0xa8] sm:$0xff]
        %v303 = vld [vmem:[%s218 + $0xb0] sm:$0xff]
        %v304 = vld [vmem:[%s218 + $0xb8] sm:$0xff]
        %v305 = vld [vmem:[%s218 + $0xc0] sm:$0xff]
        %v306 = vld [vmem:[%s218 + $0xc8] sm:$0xff]
        %v307 = vld [vmem:[%s218 + $0xd0] sm:$0xff]
        %v308 = vld [vmem:[%s218 + $0xd8] sm:$0xff]
        %v309 = vld [vmem:[%s218 + $0xe0] sm:$0xff]
        %v310 = vld [vmem:[%s218 + $0xe8] sm:$0xff]
        %v311 = vld [vmem:[%s218 + $0xf0] sm:$0xff]
        %v312 = vld [vmem:[%s218 + $0xf8] sm:$0xff]
        %v345 = vunpack.c.l.b16 %v249
        %v346 = vunpack.c.h.b16 %v249
        %v347 = vunpack.c.l.b16 %v250
        %v348 = vunpack.c.h.b16 %v250
        %v349 = vunpack.c.l.b16 %v251
        %v350 = vunpack.c.h.b16 %v251
        %v351 = vunpack.c.l.b16 %v252
        %v352 = vunpack.c.h.b16 %v252
        %v353 = vunpack.c.l.b16 %v253
        %v354 = vunpack.c.h.b16 %v253
        %v355 = vunpack.c.l.b16 %v254
        %v356 = vunpack.c.h.b16 %v254
        %v357 = vunpack.c.l.b16 %v255
        %v358 = vunpack.c.h.b16 %v255
        %v359 = vunpack.c.l.b16 %v256
        %v360 = vunpack.c.h.b16 %v256
        %v361 = vunpack.c.l.b16 %v257
        %v362 = vunpack.c.h.b16 %v257
        %v363 = vunpack.c.l.b16 %v258
        %v364 = vunpack.c.h.b16 %v258
        %v365 = vunpack.c.l.b16 %v259
        %v366 = vunpack.c.h.b16 %v259
        %v367 = vunpack.c.l.b16 %v260
        %v368 = vunpack.c.h.b16 %v260
        %v369 = vunpack.c.l.b16 %v261
        %v370 = vunpack.c.h.b16 %v261
        %v371 = vunpack.c.l.b16 %v262
        %v372 = vunpack.c.h.b16 %v262
        %v373 = vunpack.c.l.b16 %v263
        %v374 = vunpack.c.h.b16 %v263
        %v375 = vunpack.c.l.b16 %v264
        %v376 = vunpack.c.h.b16 %v264
        %v377 = vunpack.c.l.b16 %v265
        %v378 = vunpack.c.h.b16 %v265
        %v379 = vunpack.c.l.b16 %v266
        %v380 = vunpack.c.h.b16 %v266
        %v381 = vunpack.c.l.b16 %v267
        %v382 = vunpack.c.h.b16 %v267
        %v383 = vunpack.c.l.b16 %v268
        %v384 = vunpack.c.h.b16 %v268
        %v385 = vunpack.c.l.b16 %v269
        %v386 = vunpack.c.h.b16 %v269
        %v387 = vunpack.c.l.b16 %v270
        %v388 = vunpack.c.h.b16 %v270
        %v389 = vunpack.c.l.b16 %v271
        %v390 = vunpack.c.h.b16 %v271
        %v391 = vunpack.c.l.b16 %v272
        %v392 = vunpack.c.h.b16 %v272
        %v393 = vunpack.c.l.b16 %v273
        %v394 = vunpack.c.h.b16 %v273
        %v395 = vunpack.c.l.b16 %v274
        %v396 = vunpack.c.h.b16 %v274
        %v397 = vunpack.c.l.b16 %v275
        %v398 = vunpack.c.h.b16 %v275
        %v399 = vunpack.c.l.b16 %v276
        %v400 = vunpack.c.h.b16 %v276
        %v401 = vunpack.c.l.b16 %v277
        %v402 = vunpack.c.h.b16 %v277
        %v403 = vunpack.c.l.b16 %v278
        %v404 = vunpack.c.h.b16 %v278
        %v405 = vunpack.c.l.b16 %v279
        %v406 = vunpack.c.h.b16 %v279
        %v407 = vunpack.c.l.b16 %v280
        %v408 = vunpack.c.h.b16 %v280
        %v409 = vpack.c.b16 %v347, %v345
        %v410 = vpack.c.b16 %v348, %v346
        %v411 = vpack.c.b16 %v351, %v349
        %v412 = vpack.c.b16 %v352, %v350
        %v413 = vpack.c.b16 %v355, %v353
        %v414 = vpack.c.b16 %v356, %v354
        %v415 = vpack.c.b16 %v359, %v357
        %v416 = vpack.c.b16 %v360, %v358
        %v417 = vpack.c.b16 %v363, %v361
        %v418 = vpack.c.b16 %v364, %v362
        %v419 = vpack.c.b16 %v367, %v365
        %v420 = vpack.c.b16 %v368, %v366
        %v421 = vpack.c.b16 %v371, %v369
        %v422 = vpack.c.b16 %v372, %v370
        %v423 = vpack.c.b16 %v375, %v373
        %v424 = vpack.c.b16 %v376, %v374
        %v425 = vpack.c.b16 %v379, %v377
        %v426 = vpack.c.b16 %v380, %v378
        %v427 = vpack.c.b16 %v383, %v381
        %v428 = vpack.c.b16 %v384, %v382
        %v429 = vpack.c.b16 %v387, %v385
        %v430 = vpack.c.b16 %v388, %v386
        %v431 = vpack.c.b16 %v391, %v389
        %v432 = vpack.c.b16 %v392, %v390
        %v433 = vpack.c.b16 %v395, %v393
        %v434 = vpack.c.b16 %v396, %v394
        %v435 = vpack.c.b16 %v399, %v397
        %v436 = vpack.c.b16 %v400, %v398
        %v437 = vpack.c.b16 %v403, %v401
        %v438 = vpack.c.b16 %v404, %v402
        %v439 = vpack.c.b16 %v407, %v405
        %v440 = vpack.c.b16 %v408, %v406
        %v505 = vunpack.c.l.b16 %v281
        %v506 = vunpack.c.h.b16 %v281
        %v507 = vunpack.c.l.b16 %v282
        %v508 = vunpack.c.h.b16 %v282
        %v509 = vunpack.c.l.b16 %v283
        %v510 = vunpack.c.h.b16 %v283
        %v511 = vunpack.c.l.b16 %v284
        %v512 = vunpack.c.h.b16 %v284
        %v513 = vunpack.c.l.b16 %v285
        %v514 = vunpack.c.h.b16 %v285
        %v515 = vunpack.c.l.b16 %v286
        %v516 = vunpack.c.h.b16 %v286
        %v517 = vunpack.c.l.b16 %v287
        %v518 = vunpack.c.h.b16 %v287
        %v519 = vunpack.c.l.b16 %v288
        %v520 = vunpack.c.h.b16 %v288
        %v521 = vunpack.c.l.b16 %v289
        %v522 = vunpack.c.h.b16 %v289
        %v523 = vunpack.c.l.b16 %v290
        %v524 = vunpack.c.h.b16 %v290
        %v525 = vunpack.c.l.b16 %v291
        %v526 = vunpack.c.h.b16 %v291
        %v527 = vunpack.c.l.b16 %v292
        %v528 = vunpack.c.h.b16 %v292
        %v529 = vunpack.c.l.b16 %v293
        %v530 = vunpack.c.h.b16 %v293
        %v531 = vunpack.c.l.b16 %v294
        %v532 = vunpack.c.h.b16 %v294
        %v533 = vunpack.c.l.b16 %v295
        %v534 = vunpack.c.h.b16 %v295
        %v535 = vunpack.c.l.b16 %v296
        %v536 = vunpack.c.h.b16 %v296
        %v537 = vunpack.c.l.b16 %v297
        %v538 = vunpack.c.h.b16 %v297
        %v539 = vunpack.c.l.b16 %v298
        %v540 = vunpack.c.h.b16 %v298
        %v541 = vunpack.c.l.b16 %v299
        %v542 = vunpack.c.h.b16 %v299
        %v543 = vunpack.c.l.b16 %v300
        %v544 = vunpack.c.h.b16 %v300
        %v545 = vunpack.c.l.b16 %v301
        %v546 = vunpack.c.h.b16 %v301
        %v547 = vunpack.c.l.b16 %v302
        %v548 = vunpack.c.h.b16 %v302
        %v549 = vunpack.c.l.b16 %v303
        %v550 = vunpack.c.h.b16 %v303
        %v551 = vunpack.c.l.b16 %v304
        %v552 = vunpack.c.h.b16 %v304
        %v553 = vunpack.c.l.b16 %v305
        %v554 = vunpack.c.h.b16 %v305
        %v555 = vunpack.c.l.b16 %v306
        %v556 = vunpack.c.h.b16 %v306
        %v557 = vunpack.c.l.b16 %v307
        %v558 = vunpack.c.h.b16 %v307
        %v559 = vunpack.c.l.b16 %v308
        %v560 = vunpack.c.h.b16 %v308
        %v561 = vunpack.c.l.b16 %v309
        %v562 = vunpack.c.h.b16 %v309
        %v563 = vunpack.c.l.b16 %v310
        %v564 = vunpack.c.h.b16 %v310
        %v565 = vunpack.c.l.b16 %v311
        %v566 = vunpack.c.h.b16 %v311
        %v567 = vunpack.c.l.b16 %v312
        %v568 = vunpack.c.h.b16 %v312
        %v569 = vpack.c.b16 %v507, %v505
        %v570 = vpack.c.b16 %v508, %v506
        %v571 = vpack.c.b16 %v511, %v509
        %v572 = vpack.c.b16 %v512, %v510
        %v573 = vpack.c.b16 %v515, %v513
        %v574 = vpack.c.b16 %v516, %v514
        %v575 = vpack.c.b16 %v519, %v517
        %v576 = vpack.c.b16 %v520, %v518
        %v577 = vpack.c.b16 %v523, %v521
        %v578 = vpack.c.b16 %v524, %v522
        %v579 = vpack.c.b16 %v527, %v525
        %v580 = vpack.c.b16 %v528, %v526
        %v581 = vpack.c.b16 %v531, %v529
        %v582 = vpack.c.b16 %v532, %v530
        %v583 = vpack.c.b16 %v535, %v533
        %v584 = vpack.c.b16 %v536, %v534
        %v585 = vpack.c.b16 %v539, %v537
        %v586 = vpack.c.b16 %v540, %v538
        %v587 = vpack.c.b16 %v543, %v541
        %v588 = vpack.c.b16 %v544, %v542
        %v589 = vpack.c.b16 %v547, %v545
        %v590 = vpack.c.b16 %v548, %v546
        %v591 = vpack.c.b16 %v551, %v549
        %v592 = vpack.c.b16 %v552, %v550
        %v593 = vpack.c.b16 %v555, %v553
        %v594 = vpack.c.b16 %v556, %v554
        %v595 = vpack.c.b16 %v559, %v557
        %v596 = vpack.c.b16 %v560, %v558
        %v597 = vpack.c.b16 %v563, %v561
        %v598 = vpack.c.b16 %v564, %v562
        %v599 = vpack.c.b16 %v567, %v565
        %v600 = vpack.c.b16 %v568, %v566
        %633 = vmatpush.bf16.msra.mxu0 %v583
        %634 = vmatpush.bf16.msra.mxu0 %v581
        %635 = vmatpush.bf16.msra.mxu0 %v579
        %636 = vmatpush.bf16.msra.mxu0 %v577
        %637 = vmatpush.bf16.msra.mxu0 %v575
        %638 = vmatpush.bf16.msra.mxu0 %v573
        %639 = vmatpush.bf16.msra.mxu0 %v571
        %640 = vmatpush.bf16.msra.mxu0 %v569
        %641 = vmatmul.bf16.gmra.mxu0 %v409
        %v642 = vpop.f32.mrf.mxu0
        %v643 = vadd.f32 0.0, %v642
        %v644 = vpop.f32.mrf.mxu0
        %v645 = vadd.f32 0.0, %v644
        %646 = vmatmul.bf16.gmra.mxu0 %v411
        %v647 = vpop.f32.mrf.mxu0
        %v648 = vadd.f32 0.0, %v647
        %v649 = vpop.f32.mrf.mxu0
        %v650 = vadd.f32 0.0, %v649
        %651 = vmatmul.bf16.gmra.mxu0 %v413
        %v652 = vpop.f32.mrf.mxu0
        %v653 = vadd.f32 0.0, %v652
        %v654 = vpop.f32.mrf.mxu0
        %v655 = vadd.f32 0.0, %v654
        %656 = vmatmul.bf16.gmra.mxu0 %v415
        %v657 = vpop.f32.mrf.mxu0
        %v658 = vadd.f32 0.0, %v657
        %v659 = vpop.f32.mrf.mxu0
        %v660 = vadd.f32 0.0, %v659
        %661 = vmatmul.bf16.gmra.mxu0 %v417
        %v662 = vpop.f32.mrf.mxu0
        %v663 = vadd.f32 0.0, %v662
        %v664 = vpop.f32.mrf.mxu0
        %v665 = vadd.f32 0.0, %v664
        %666 = vmatmul.bf16.gmra.mxu0 %v419
        %v667 = vpop.f32.mrf.mxu0
        %v668 = vadd.f32 0.0, %v667
        %v669 = vpop.f32.mrf.mxu0
        %v670 = vadd.f32 0.0, %v669
        %671 = vmatmul.bf16.gmra.mxu0 %v421
        %v672 = vpop.f32.mrf.mxu0
        %v673 = vadd.f32 0.0, %v672
        %v674 = vpop.f32.mrf.mxu0
        %v675 = vadd.f32 0.0, %v674
        %676 = vmatmul.bf16.gmra.mxu0 %v423
        %v677 = vpop.f32.mrf.mxu0
        %v678 = vadd.f32 0.0, %v677
        %v679 = vpop.f32.mrf.mxu0
        %v680 = vadd.f32 0.0, %v679
        %681 = vmatmul.bf16.gmra.mxu0 %v425
        %v682 = vpop.f32.mrf.mxu0
        %v683 = vadd.f32 0.0, %v682
        %v684 = vpop.f32.mrf.mxu0
        %v685 = vadd.f32 0.0, %v684
        %686 = vmatmul.bf16.gmra.mxu0 %v427
        %v687 = vpop.f32.mrf.mxu0
        %v688 = vadd.f32 0.0, %v687
        %v689 = vpop.f32.mrf.mxu0
        %v690 = vadd.f32 0.0, %v689
        %691 = vmatmul.bf16.gmra.mxu0 %v429
        %v692 = vpop.f32.mrf.mxu0
        %v693 = vadd.f32 0.0, %v692
        %v694 = vpop.f32.mrf.mxu0
        %v695 = vadd.f32 0.0, %v694
        %696 = vmatmul.bf16.gmra.mxu0 %v431
        %v697 = vpop.f32.mrf.mxu0
        %v698 = vadd.f32 0.0, %v697
        %v699 = vpop.f32.mrf.mxu0
        %v700 = vadd.f32 0.0, %v699
        %701 = vmatmul.bf16.gmra.mxu0 %v433
        %v702 = vpop.f32.mrf.mxu0
        %v703 = vadd.f32 0.0, %v702
        %v704 = vpop.f32.mrf.mxu0
        %v705 = vadd.f32 0.0, %v704
        %706 = vmatmul.bf16.gmra.mxu0 %v435
        %v707 = vpop.f32.mrf.mxu0
        %v708 = vadd.f32 0.0, %v707
        %v709 = vpop.f32.mrf.mxu0
        %v710 = vadd.f32 0.0, %v709
        %711 = vmatmul.bf16.gmra.mxu0 %v437
        %v712 = vpop.f32.mrf.mxu0
        %v713 = vadd.f32 0.0, %v712
        %v714 = vpop.f32.mrf.mxu0
        %v715 = vadd.f32 0.0, %v714
        %716 = vmatmul.bf16.gmra.mxu0 %v439
        %v717 = vpop.f32.mrf.mxu0
        %v718 = vadd.f32 0.0, %v717
        %v719 = vpop.f32.mrf.mxu0
        %v720 = vadd.f32 0.0, %v719
        %721 = vdwg.mxu0
        %722 = vmatpush.bf16.msra.mxu0 %v599
        %723 = vmatpush.bf16.msra.mxu0 %v597
        %724 = vmatpush.bf16.msra.mxu0 %v595
        %725 = vmatpush.bf16.msra.mxu0 %v593
        %726 = vmatpush.bf16.msra.mxu0 %v591
        %727 = vmatpush.bf16.msra.mxu0 %v589
        %728 = vmatpush.bf16.msra.mxu0 %v587
        %729 = vmatpush.bf16.msra.mxu0 %v585
        %730 = vmatmul.bf16.gmra.mxu0 %v410
        %v731 = vpop.f32.mrf.mxu0
        %v732 = vadd.f32 %v643, %v731
        %v733 = vpop.f32.mrf.mxu0
        %v734 = vadd.f32 %v645, %v733
        %735 = vmatmul.bf16.gmra.mxu0 %v412
        %v736 = vpop.f32.mrf.mxu0
        %v737 = vadd.f32 %v648, %v736
        %v738 = vpop.f32.mrf.mxu0
        %v739 = vadd.f32 %v650, %v738
        %740 = vmatmul.bf16.gmra.mxu0 %v414
        %v741 = vpop.f32.mrf.mxu0
        %v742 = vadd.f32 %v653, %v741
        %v743 = vpop.f32.mrf.mxu0
        %v744 = vadd.f32 %v655, %v743
        %745 = vmatmul.bf16.gmra.mxu0 %v416
        %v746 = vpop.f32.mrf.mxu0
        %v747 = vadd.f32 %v658, %v746
        %v748 = vpop.f32.mrf.mxu0
        %v749 = vadd.f32 %v660, %v748
        %750 = vmatmul.bf16.gmra.mxu0 %v418
        %v751 = vpop.f32.mrf.mxu0
        %v752 = vadd.f32 %v663, %v751
        %v753 = vpop.f32.mrf.mxu0
        %v754 = vadd.f32 %v665, %v753
        %755 = vmatmul.bf16.gmra.mxu0 %v420
        %v756 = vpop.f32.mrf.mxu0
        %v757 = vadd.f32 %v668, %v756
        %v758 = vpop.f32.mrf.mxu0
        %v759 = vadd.f32 %v670, %v758
        %760 = vmatmul.bf16.gmra.mxu0 %v422
        %v761 = vpop.f32.mrf.mxu0
        %v762 = vadd.f32 %v673, %v761
        %v763 = vpop.f32.mrf.mxu0
        %v764 = vadd.f32 %v675, %v763
        %765 = vmatmul.bf16.gmra.mxu0 %v424
        %v766 = vpop.f32.mrf.mxu0
        %v767 = vadd.f32 %v678, %v766
        %v768 = vpop.f32.mrf.mxu0
        %v769 = vadd.f32 %v680, %v768
        %770 = vmatmul.bf16.gmra.mxu0 %v426
        %v771 = vpop.f32.mrf.mxu0
        %v772 = vadd.f32 %v683, %v771
        %v773 = vpop.f32.mrf.mxu0
        %v774 = vadd.f32 %v685, %v773
        %775 = vmatmul.bf16.gmra.mxu0 %v428
        %v776 = vpop.f32.mrf.mxu0
        %v777 = vadd.f32 %v688, %v776
        %v778 = vpop.f32.mrf.mxu0
        %v779 = vadd.f32 %v690, %v778
        %780 = vmatmul.bf16.gmra.mxu0 %v430
        %v781 = vpop.f32.mrf.mxu0
        %v782 = vadd.f32 %v693, %v781
        %v783 = vpop.f32.mrf.mxu0
        %v784 = vadd.f32 %v695, %v783
        %785 = vmatmul.bf16.gmra.mxu0 %v432
        %v786 = vpop.f32.mrf.mxu0
        %v787 = vadd.f32 %v698, %v786
        %v788 = vpop.f32.mrf.mxu0
        %v789 = vadd.f32 %v700, %v788
        %790 = vmatmul.bf16.gmra.mxu0 %v434
        %v791 = vpop.f32.mrf.mxu0
        %v792 = vadd.f32 %v703, %v791
        %v793 = vpop.f32.mrf.mxu0
        %v794 = vadd.f32 %v705, %v793
        %795 = vmatmul.bf16.gmra.mxu0 %v436
        %v796 = vpop.f32.mrf.mxu0
        %v797 = vadd.f32 %v708, %v796
        %v798 = vpop.f32.mrf.mxu0
        %v799 = vadd.f32 %v710, %v798
        %800 = vmatmul.bf16.gmra.mxu0 %v438
        %v801 = vpop.f32.mrf.mxu0
        %v802 = vadd.f32 %v713, %v801
        %v803 = vpop.f32.mrf.mxu0
        %v804 = vadd.f32 %v715, %v803
        %805 = vmatmul.bf16.gmra.mxu0 %v440
        %v806 = vpop.f32.mrf.mxu0
        %v807 = vadd.f32 %v718, %v806
        %v808 = vpop.f32.mrf.mxu0
        %v809 = vadd.f32 %v720, %v808
        %810 = vdwg.mxu0
        %811 = vmatpush.bf16.msra.mxu0 %v584
        %812 = vmatpush.bf16.msra.mxu0 %v582
        %813 = vmatpush.bf16.msra.mxu0 %v580
        %814 = vmatpush.bf16.msra.mxu0 %v578
        %815 = vmatpush.bf16.msra.mxu0 %v576
        %816 = vmatpush.bf16.msra.mxu0 %v574
        %817 = vmatpush.bf16.msra.mxu0 %v572
        %818 = vmatpush.bf16.msra.mxu0 %v570
        %819 = vmatmul.bf16.gmra.mxu0 %v409
        %v820 = vpop.f32.mrf.mxu0
        %v821 = vadd.f32 0.0, %v820
        %v822 = vpop.f32.mrf.mxu0
        %v823 = vadd.f32 0.0, %v822
        %824 = vmatmul.bf16.gmra.mxu0 %v411
        %v825 = vpop.f32.mrf.mxu0
        %v826 = vadd.f32 0.0, %v825
        %v827 = vpop.f32.mrf.mxu0
        %v828 = vadd.f32 0.0, %v827
        %829 = vmatmul.bf16.gmra.mxu0 %v413
        %v830 = vpop.f32.mrf.mxu0
        %v831 = vadd.f32 0.0, %v830
        %v832 = vpop.f32.mrf.mxu0
        %v833 = vadd.f32 0.0, %v832
        %834 = vmatmul.bf16.gmra.mxu0 %v415
        %v835 = vpop.f32.mrf.mxu0
        %v836 = vadd.f32 0.0, %v835
        %v837 = vpop.f32.mrf.mxu0
        %v838 = vadd.f32 0.0, %v837
        %839 = vmatmul.bf16.gmra.mxu0 %v417
        %v840 = vpop.f32.mrf.mxu0
        %v841 = vadd.f32 0.0, %v840
        %v842 = vpop.f32.mrf.mxu0
        %v843 = vadd.f32 0.0, %v842
        %844 = vmatmul.bf16.gmra.mxu0 %v419
        %v845 = vpop.f32.mrf.mxu0
        %v846 = vadd.f32 0.0, %v845
        %v847 = vpop.f32.mrf.mxu0
        %v848 = vadd.f32 0.0, %v847
        %849 = vmatmul.bf16.gmra.mxu0 %v421
        %v850 = vpop.f32.mrf.mxu0
        %v851 = vadd.f32 0.0, %v850
        %v852 = vpop.f32.mrf.mxu0
        %v853 = vadd.f32 0.0, %v852
        %854 = vmatmul.bf16.gmra.mxu0 %v423
        %v855 = vpop.f32.mrf.mxu0
        %v856 = vadd.f32 0.0, %v855
        %v857 = vpop.f32.mrf.mxu0
        %v858 = vadd.f32 0.0, %v857
        %859 = vmatmul.bf16.gmra.mxu0 %v425
        %v860 = vpop.f32.mrf.mxu0
        %v861 = vadd.f32 0.0, %v860
        %v862 = vpop.f32.mrf.mxu0
        %v863 = vadd.f32 0.0, %v862
        %864 = vmatmul.bf16.gmra.mxu0 %v427
        %v865 = vpop.f32.mrf.mxu0
        %v866 = vadd.f32 0.0, %v865
        %v867 = vpop.f32.mrf.mxu0
        %v868 = vadd.f32 0.0, %v867
        %869 = vmatmul.bf16.gmra.mxu0 %v429
        %v870 = vpop.f32.mrf.mxu0
        %v871 = vadd.f32 0.0, %v870
        %v872 = vpop.f32.mrf.mxu0
        %v873 = vadd.f32 0.0, %v872
        %874 = vmatmul.bf16.gmra.mxu0 %v431
        %v875 = vpop.f32.mrf.mxu0
        %v876 = vadd.f32 0.0, %v875
        %v877 = vpop.f32.mrf.mxu0
        %v878 = vadd.f32 0.0, %v877
        %879 = vmatmul.bf16.gmra.mxu0 %v433
        %v880 = vpop.f32.mrf.mxu0
        %v881 = vadd.f32 0.0, %v880
        %v882 = vpop.f32.mrf.mxu0
        %v883 = vadd.f32 0.0, %v882
        %884 = vmatmul.bf16.gmra.mxu0 %v435
        %v885 = vpop.f32.mrf.mxu0
        %v886 = vadd.f32 0.0, %v885
        %v887 = vpop.f32.mrf.mxu0
        %v888 = vadd.f32 0.0, %v887
        %889 = vmatmul.bf16.gmra.mxu0 %v437
        %v890 = vpop.f32.mrf.mxu0
        %v891 = vadd.f32 0.0, %v890
        %v892 = vpop.f32.mrf.mxu0
        %v893 = vadd.f32 0.0, %v892
        %894 = vmatmul.bf16.gmra.mxu0 %v439
        %v895 = vpop.f32.mrf.mxu0
        %v896 = vadd.f32 0.0, %v895
        %v897 = vpop.f32.mrf.mxu0
        %v898 = vadd.f32 0.0, %v897
        %899 = vdwg.mxu0
        %900 = vmatpush.bf16.msra.mxu0 %v600
        %901 = vmatpush.bf16.msra.mxu0 %v598
        %902 = vmatpush.bf16.msra.mxu0 %v596
        %903 = vmatpush.bf16.msra.mxu0 %v594
        %904 = vmatpush.bf16.msra.mxu0 %v592
        %905 = vmatpush.bf16.msra.mxu0 %v590
        %906 = vmatpush.bf16.msra.mxu0 %v588
        %907 = vmatpush.bf16.msra.mxu0 %v586
        %908 = vmatmul.bf16.gmra.mxu0 %v410
        %v909 = vpop.f32.mrf.mxu0
        %v910 = vadd.f32 %v821, %v909
        %v911 = vpop.f32.mrf.mxu0
        %v912 = vadd.f32 %v823, %v911
        %913 = vmatmul.bf16.gmra.mxu0 %v412
        %v914 = vpop.f32.mrf.mxu0
        %v915 = vadd.f32 %v826, %v914
        %v916 = vpop.f32.mrf.mxu0
        %v917 = vadd.f32 %v828, %v916
        %918 = vmatmul.bf16.gmra.mxu0 %v414
        %v919 = vpop.f32.mrf.mxu0
        %v920 = vadd.f32 %v831, %v919
        %v921 = vpop.f32.mrf.mxu0
        %v922 = vadd.f32 %v833, %v921
        %923 = vmatmul.bf16.gmra.mxu0 %v416
        %v924 = vpop.f32.mrf.mxu0
        %v925 = vadd.f32 %v836, %v924
        %v926 = vpop.f32.mrf.mxu0
        %v927 = vadd.f32 %v838, %v926
        %928 = vmatmul.bf16.gmra.mxu0 %v418
        %v929 = vpop.f32.mrf.mxu0
        %v930 = vadd.f32 %v841, %v929
        %v931 = vpop.f32.mrf.mxu0
        %v932 = vadd.f32 %v843, %v931
        %933 = vmatmul.bf16.gmra.mxu0 %v420
        %v934 = vpop.f32.mrf.mxu0
        %v935 = vadd.f32 %v846, %v934
        %v936 = vpop.f32.mrf.mxu0
        %v937 = vadd.f32 %v848, %v936
        %938 = vmatmul.bf16.gmra.mxu0 %v422
        %v939 = vpop.f32.mrf.mxu0
        %v940 = vadd.f32 %v851, %v939
        %v941 = vpop.f32.mrf.mxu0
        %v942 = vadd.f32 %v853, %v941
        %943 = vmatmul.bf16.gmra.mxu0 %v424
        %v944 = vpop.f32.mrf.mxu0
        %v945 = vadd.f32 %v856, %v944
        %v946 = vpop.f32.mrf.mxu0
        %v947 = vadd.f32 %v858, %v946
        %948 = vmatmul.bf16.gmra.mxu0 %v426
        %v949 = vpop.f32.mrf.mxu0
        %v950 = vadd.f32 %v861, %v949
        %v951 = vpop.f32.mrf.mxu0
        %v952 = vadd.f32 %v863, %v951
        %953 = vmatmul.bf16.gmra.mxu0 %v428
        %v954 = vpop.f32.mrf.mxu0
        %v955 = vadd.f32 %v866, %v954
        %v956 = vpop.f32.mrf.mxu0
        %v957 = vadd.f32 %v868, %v956
        %958 = vmatmul.bf16.gmra.mxu0 %v430
        %v959 = vpop.f32.mrf.mxu0
        %v960 = vadd.f32 %v871, %v959
        %v961 = vpop.f32.mrf.mxu0
        %v962 = vadd.f32 %v873, %v961
        %963 = vmatmul.bf16.gmra.mxu0 %v432
        %v964 = vpop.f32.mrf.mxu0
        %v965 = vadd.f32 %v876, %v964
        %v966 = vpop.f32.mrf.mxu0
        %v967 = vadd.f32 %v878, %v966
        %968 = vmatmul.bf16.gmra.mxu0 %v434
        %v969 = vpop.f32.mrf.mxu0
        %v970 = vadd.f32 %v881, %v969
        %v971 = vpop.f32.mrf.mxu0
        %v972 = vadd.f32 %v883, %v971
        %973 = vmatmul.bf16.gmra.mxu0 %v436
        %v974 = vpop.f32.mrf.mxu0
        %v975 = vadd.f32 %v886, %v974
        %v976 = vpop.f32.mrf.mxu0
        %v977 = vadd.f32 %v888, %v976
        %978 = vmatmul.bf16.gmra.mxu0 %v438
        %v979 = vpop.f32.mrf.mxu0
        %v980 = vadd.f32 %v891, %v979
        %v981 = vpop.f32.mrf.mxu0
        %v982 = vadd.f32 %v893, %v981
        %983 = vmatmul.bf16.gmra.mxu0 %v440
        %v984 = vpop.f32.mrf.mxu0
        %v985 = vadd.f32 %v896, %v984
        %v986 = vpop.f32.mrf.mxu0
        %v987 = vadd.f32 %v898, %v986
        %988 = vdwg.mxu0
        %v989 = vpack.c.bf16 %v734, %v732
        %v990 = vpack.c.bf16 %v912, %v910
        %v991 = vpack.c.bf16 %v739, %v737
        %v992 = vpack.c.bf16 %v917, %v915
        %v993 = vpack.c.bf16 %v744, %v742
        %v994 = vpack.c.bf16 %v922, %v920
        %v995 = vpack.c.bf16 %v749, %v747
        %v996 = vpack.c.bf16 %v927, %v925
        %v997 = vpack.c.bf16 %v754, %v752
        %v998 = vpack.c.bf16 %v932, %v930
        %v999 = vpack.c.bf16 %v759, %v757
        %v1000 = vpack.c.bf16 %v937, %v935
        %v1001 = vpack.c.bf16 %v764, %v762
        %v1002 = vpack.c.bf16 %v942, %v940
        %v1003 = vpack.c.bf16 %v769, %v767
        %v1004 = vpack.c.bf16 %v947, %v945
        %v1005 = vpack.c.bf16 %v774, %v772
        %v1006 = vpack.c.bf16 %v952, %v950
        %v1007 = vpack.c.bf16 %v779, %v777
        %v1008 = vpack.c.bf16 %v957, %v955
        %v1009 = vpack.c.bf16 %v784, %v782
        %v1010 = vpack.c.bf16 %v962, %v960
        %v1011 = vpack.c.bf16 %v789, %v787
        %v1012 = vpack.c.bf16 %v967, %v965
        %v1013 = vpack.c.bf16 %v794, %v792
        %v1014 = vpack.c.bf16 %v972, %v970
        %v1015 = vpack.c.bf16 %v799, %v797
        %v1016 = vpack.c.bf16 %v977, %v975
        %v1017 = vpack.c.bf16 %v804, %v802
        %v1018 = vpack.c.bf16 %v982, %v980
        %v1019 = vpack.c.bf16 %v809, %v807
        %v1020 = vpack.c.bf16 %v987, %v985
        %v1021 = vld [vmem:[#allocation7] sm:$0xff]
        %v1022 = vld [vmem:[#allocation7 + $0x8] sm:$0xf]
        %v1023 = vld [vmem:[#allocation7 + $0xc] sm:$0xff]
        %v1024 = vld [vmem:[#allocation7 + $0x14] sm:$0xf]
        %v1025 = vld [vmem:[#allocation7 + $0x18] sm:$0xff]
        %v1026 = vld [vmem:[#allocation7 + $0x20] sm:$0xf]
        %v1027 = vld [vmem:[#allocation7 + $0x24] sm:$0xff]
        %v1028 = vld [vmem:[#allocation7 + $0x2c] sm:$0xf]
        %v1029 = vld [vmem:[#allocation7 + $0x30] sm:$0xff]
        %v1030 = vld [vmem:[#allocation7 + $0x38] sm:$0xf]
        %v1031 = vld [vmem:[#allocation7 + $0x3c] sm:$0xff]
        %v1032 = vld [vmem:[#allocation7 + $0x44] sm:$0xf]
        %v1033 = vld [vmem:[#allocation7 + $0x48] sm:$0xff]
        %v1034 = vld [vmem:[#allocation7 + $0x50] sm:$0xf]
        %v1035 = vld [vmem:[#allocation7 + $0x54] sm:$0xff]
        %v1036 = vld [vmem:[#allocation7 + $0x5c] sm:$0xf]
        %v1037 = vld [vmem:[#allocation7 + $0x60] sm:$0xff]
        %v1038 = vld [vmem:[#allocation7 + $0x68] sm:$0xf]
        %v1039 = vld [vmem:[#allocation7 + $0x6c] sm:$0xff]
        %v1040 = vld [vmem:[#allocation7 + $0x74] sm:$0xf]
        %v1041 = vld [vmem:[#allocation7 + $0x78] sm:$0xff]
        %v1042 = vld [vmem:[#allocation7 + $0x80] sm:$0xf]
        %v1043 = vld [vmem:[#allocation7 + $0x84] sm:$0xff]
        %v1044 = vld [vmem:[#allocation7 + $0x8c] sm:$0xf]
        %v1045 = vld [vmem:[#allocation7 + $0x90] sm:$0xff]
        %v1046 = vld [vmem:[#allocation7 + $0x98] sm:$0xf]
        %v1047 = vld [vmem:[#allocation7 + $0x9c] sm:$0xff]
        %v1048 = vld [vmem:[#allocation7 + $0xa4] sm:$0xf]
        %v1049 = vld [vmem:[#allocation7 + $0xa8] sm:$0xff]
        %v1050 = vld [vmem:[#allocation7 + $0xb0] sm:$0xf]
        %v1051 = vld [vmem:[#allocation7 + $0xb4] sm:$0xff]
        %v1052 = vld [vmem:[#allocation7 + $0xbc] sm:$0xf]
        %v1053 = vld [vmem:[#allocation7 + $0xc0] sm:$0xff]
        %v1054 = vld [vmem:[#allocation7 + $0xc8] sm:$0xf]
        %v1055 = vld [vmem:[#allocation7 + $0xcc] sm:$0xff]
        %v1056 = vld [vmem:[#allocation7 + $0xd4] sm:$0xf]
        %v1057 = vld [vmem:[#allocation7 + $0xd8] sm:$0xff]
        %v1058 = vld [vmem:[#allocation7 + $0xe0] sm:$0xf]
        %v1059 = vld [vmem:[#allocation7 + $0xe4] sm:$0xff]
        %v1060 = vld [vmem:[#allocation7 + $0xec] sm:$0xf]
        %v1061 = vld [vmem:[#allocation7 + $0xf0] sm:$0xff]
        %v1062 = vld [vmem:[#allocation7 + $0xf8] sm:$0xf]
        %v1063 = vld [vmem:[#allocation7 + $0xfc] sm:$0xff]
        %v1064 = vld [vmem:[#allocation7 + $0x104] sm:$0xf]
        %v1065 = vld [vmem:[#allocation7 + $0x108] sm:$0xff]
        %v1066 = vld [vmem:[#allocation7 + $0x110] sm:$0xf]
        %v1067 = vld [vmem:[#allocation7 + $0x114] sm:$0xff]
        %v1068 = vld [vmem:[#allocation7 + $0x11c] sm:$0xf]
        %v1069 = vld [vmem:[#allocation7 + $0x120] sm:$0xff]
        %v1070 = vld [vmem:[#allocation7 + $0x128] sm:$0xf]
        %v1071 = vld [vmem:[#allocation7 + $0x12c] sm:$0xff]
        %v1072 = vld [vmem:[#allocation7 + $0x134] sm:$0xf]
        %v1073 = vld [vmem:[#allocation7 + $0x138] sm:$0xff]
        %v1074 = vld [vmem:[#allocation7 + $0x140] sm:$0xf]
        %v1075 = vld [vmem:[#allocation7 + $0x144] sm:$0xff]
        %v1076 = vld [vmem:[#allocation7 + $0x14c] sm:$0xf]
        %v1077 = vld [vmem:[#allocation7 + $0x150] sm:$0xff]
        %v1078 = vld [vmem:[#allocation7 + $0x158] sm:$0xf]
        %v1079 = vld [vmem:[#allocation7 + $0x15c] sm:$0xff]
        %v1080 = vld [vmem:[#allocation7 + $0x164] sm:$0xf]
        %v1081 = vld [vmem:[#allocation7 + $0x168] sm:$0xff]
        %v1082 = vld [vmem:[#allocation7 + $0x170] sm:$0xf]
        %v1083 = vld [vmem:[#allocation7 + $0x174] sm:$0xff]
        %v1084 = vld [vmem:[#allocation7 + $0x17c] sm:$0xf]
        %v1149 = vunpack.c.l.b16 %v1021
        %v1150 = vunpack.c.h.b16 %v1021
        %v1151 = vunpack.c.l.b16 %v1022
        %v1152 = vunpack.c.l.b16 %v1023
        %v1153 = vunpack.c.h.b16 %v1023
        %v1154 = vunpack.c.l.b16 %v1024
        %v1155 = vunpack.c.l.b16 %v1025
        %v1156 = vunpack.c.h.b16 %v1025
        %v1157 = vunpack.c.l.b16 %v1026
        %v1158 = vunpack.c.l.b16 %v1027
        %v1159 = vunpack.c.h.b16 %v1027
        %v1160 = vunpack.c.l.b16 %v1028
        %v1161 = vunpack.c.l.b16 %v1029
        %v1162 = vunpack.c.h.b16 %v1029
        %v1163 = vunpack.c.l.b16 %v1030
        %v1164 = vunpack.c.l.b16 %v1031
        %v1165 = vunpack.c.h.b16 %v1031
        %v1166 = vunpack.c.l.b16 %v1032
        %v1167 = vunpack.c.l.b16 %v1033
        %v1168 = vunpack.c.h.b16 %v1033
        %v1169 = vunpack.c.l.b16 %v1034
        %v1170 = vunpack.c.l.b16 %v1035
        %v1171 = vunpack.c.h.b16 %v1035
        %v1172 = vunpack.c.l.b16 %v1036
        %v1173 = vunpack.c.l.b16 %v1037
        %v1174 = vunpack.c.h.b16 %v1037
        %v1175 = vunpack.c.l.b16 %v1038
        %v1176 = vunpack.c.l.b16 %v1039
        %v1177 = vunpack.c.h.b16 %v1039
        %v1178 = vunpack.c.l.b16 %v1040
        %v1179 = vunpack.c.l.b16 %v1041
        %v1180 = vunpack.c.h.b16 %v1041
        %v1181 = vunpack.c.l.b16 %v1042
        %v1182 = vunpack.c.l.b16 %v1043
        %v1183 = vunpack.c.h.b16 %v1043
        %v1184 = vunpack.c.l.b16 %v1044
        %v1185 = vunpack.c.l.b16 %v1045
        %v1186 = vunpack.c.h.b16 %v1045
        %v1187 = vunpack.c.l.b16 %v1046
        %v1188 = vunpack.c.l.b16 %v1047
        %v1189 = vunpack.c.h.b16 %v1047
        %v1190 = vunpack.c.l.b16 %v1048
        %v1191 = vunpack.c.l.b16 %v1049
        %v1192 = vunpack.c.h.b16 %v1049
        %v1193 = vunpack.c.l.b16 %v1050
        %v1194 = vunpack.c.l.b16 %v1051
        %v1195 = vunpack.c.h.b16 %v1051
        %v1196 = vunpack.c.l.b16 %v1052
        %v1197 = vunpack.c.l.b16 %v1053
        %v1198 = vunpack.c.h.b16 %v1053
        %v1199 = vunpack.c.l.b16 %v1054
        %v1200 = vunpack.c.l.b16 %v1055
        %v1201 = vunpack.c.h.b16 %v1055
        %v1202 = vunpack.c.l.b16 %v1056
        %v1203 = vunpack.c.l.b16 %v1057
        %v1204 = vunpack.c.h.b16 %v1057
        %v1205 = vunpack.c.l.b16 %v1058
        %v1206 = vunpack.c.l.b16 %v1059
        %v1207 = vunpack.c.h.b16 %v1059
        %v1208 = vunpack.c.l.b16 %v1060
        %v1209 = vunpack.c.l.b16 %v1061
        %v1210 = vunpack.c.h.b16 %v1061
        %v1211 = vunpack.c.l.b16 %v1062
        %v1212 = vunpack.c.l.b16 %v1063
        %v1213 = vunpack.c.h.b16 %v1063
        %v1214 = vunpack.c.l.b16 %v1064
        %v1215 = vunpack.c.l.b16 %v1065
        %v1216 = vunpack.c.h.b16 %v1065
        %v1217 = vunpack.c.l.b16 %v1066
        %v1218 = vunpack.c.l.b16 %v1067
        %v1219 = vunpack.c.h.b16 %v1067
        %v1220 = vunpack.c.l.b16 %v1068
        %v1221 = vunpack.c.l.b16 %v1069
        %v1222 = vunpack.c.h.b16 %v1069
        %v1223 = vunpack.c.l.b16 %v1070
        %v1224 = vunpack.c.l.b16 %v1071
        %v1225 = vunpack.c.h.b16 %v1071
        %v1226 = vunpack.c.l.b16 %v1072
        %v1227 = vunpack.c.l.b16 %v1073
        %v1228 = vunpack.c.h.b16 %v1073
        %v1229 = vunpack.c.l.b16 %v1074
        %v1230 = vunpack.c.l.b16 %v1075
        %v1231 = vunpack.c.h.b16 %v1075
        %v1232 = vunpack.c.l.b16 %v1076
        %v1233 = vunpack.c.l.b16 %v1077
        %v1234 = vunpack.c.h.b16 %v1077
        %v1235 = vunpack.c.l.b16 %v1078
        %v1236 = vunpack.c.l.b16 %v1079
        %v1237 = vunpack.c.h.b16 %v1079
        %v1238 = vunpack.c.l.b16 %v1080
        %v1239 = vunpack.c.l.b16 %v1081
        %v1240 = vunpack.c.h.b16 %v1081
        %v1241 = vunpack.c.l.b16 %v1082
        %v1242 = vunpack.c.l.b16 %v1083
        %v1243 = vunpack.c.h.b16 %v1083
        %v1244 = vunpack.c.l.b16 %v1084
        %v1245 = vpack.c.b16 %v1152, %v1149
        %v1246 = vpack.c.b16 %v1153, %v1150
        %v1247 = vpack.c.b16 %v1154, %v1151
        %v1248 = vpack.c.b16 %v1158, %v1155
        %v1249 = vpack.c.b16 %v1159, %v1156
        %v1250 = vpack.c.b16 %v1160, %v1157
        %v1251 = vpack.c.b16 %v1164, %v1161
        %v1252 = vpack.c.b16 %v1165, %v1162
        %v1253 = vpack.c.b16 %v1166, %v1163
        %v1254 = vpack.c.b16 %v1170, %v1167
        %v1255 = vpack.c.b16 %v1171, %v1168
        %v1256 = vpack.c.b16 %v1172, %v1169
        %v1257 = vpack.c.b16 %v1176, %v1173
        %v1258 = vpack.c.b16 %v1177, %v1174
        %v1259 = vpack.c.b16 %v1178, %v1175
        %v1260 = vpack.c.b16 %v1182, %v1179
        %v1261 = vpack.c.b16 %v1183, %v1180
        %v1262 = vpack.c.b16 %v1184, %v1181
        %v1263 = vpack.c.b16 %v1188, %v1185
        %v1264 = vpack.c.b16 %v1189, %v1186
        %v1265 = vpack.c.b16 %v1190, %v1187
        %v1266 = vpack.c.b16 %v1194, %v1191
        %v1267 = vpack.c.b16 %v1195, %v1192
        %v1268 = vpack.c.b16 %v1196, %v1193
        %v1269 = vpack.c.b16 %v1200, %v1197
        %v1270 = vpack.c.b16 %v1201, %v1198
        %v1271 = vpack.c.b16 %v1202, %v1199
        %v1272 = vpack.c.b16 %v1206, %v1203
        %v1273 = vpack.c.b16 %v1207, %v1204
        %v1274 = vpack.c.b16 %v1208, %v1205
        %v1275 = vpack.c.b16 %v1212, %v1209
        %v1276 = vpack.c.b16 %v1213, %v1210
        %v1277 = vpack.c.b16 %v1214, %v1211
        %v1278 = vpack.c.b16 %v1218, %v1215
        %v1279 = vpack.c.b16 %v1219, %v1216
        %v1280 = vpack.c.b16 %v1220, %v1217
        %v1281 = vpack.c.b16 %v1224, %v1221
        %v1282 = vpack.c.b16 %v1225, %v1222
        %v1283 = vpack.c.b16 %v1226, %v1223
        %v1284 = vpack.c.b16 %v1230, %v1227
        %v1285 = vpack.c.b16 %v1231, %v1228
        %v1286 = vpack.c.b16 %v1232, %v1229
        %v1287 = vpack.c.b16 %v1236, %v1233
        %v1288 = vpack.c.b16 %v1237, %v1234
        %v1289 = vpack.c.b16 %v1238, %v1235
        %v1290 = vpack.c.b16 %v1242, %v1239
        %v1291 = vpack.c.b16 %v1243, %v1240
        %v1292 = vpack.c.b16 %v1244, %v1241
        %1341 = vmatpush.bf16.msra.mxu0 %v1266
        %1342 = vmatpush.bf16.msra.mxu0 %v1263
        %1343 = vmatpush.bf16.msra.mxu0 %v1260
        %1344 = vmatpush.bf16.msra.mxu0 %v1257
        %1345 = vmatpush.bf16.msra.mxu0 %v1254
        %1346 = vmatpush.bf16.msra.mxu0 %v1251
        %1347 = vmatpush.bf16.msra.mxu0 %v1248
        %1348 = vmatpush.bf16.msra.mxu0 %v1245
        %1349 = vmatmul.bf16.gmra.mxu0 %v989
        %v1350 = vpop.f32.mrf.mxu0
        %v1351 = vadd.f32 0.0, %v1350
        %v1352 = vpop.f32.mrf.mxu0
        %v1353 = vadd.f32 0.0, %v1352
        %1354 = vmatmul.bf16.gmra.mxu0 %v991
        %v1355 = vpop.f32.mrf.mxu0
        %v1356 = vadd.f32 0.0, %v1355
        %v1357 = vpop.f32.mrf.mxu0
        %v1358 = vadd.f32 0.0, %v1357
        %1359 = vmatmul.bf16.gmra.mxu0 %v993
        %v1360 = vpop.f32.mrf.mxu0
        %v1361 = vadd.f32 0.0, %v1360
        %v1362 = vpop.f32.mrf.mxu0
        %v1363 = vadd.f32 0.0, %v1362
        %1364 = vmatmul.bf16.gmra.mxu0 %v995
        %v1365 = vpop.f32.mrf.mxu0
        %v1366 = vadd.f32 0.0, %v1365
        %v1367 = vpop.f32.mrf.mxu0
        %v1368 = vadd.f32 0.0, %v1367
        %1369 = vmatmul.bf16.gmra.mxu0 %v997
        %v1370 = vpop.f32.mrf.mxu0
        %v1371 = vadd.f32 0.0, %v1370
        %v1372 = vpop.f32.mrf.mxu0
        %v1373 = vadd.f32 0.0, %v1372
        %1374 = vmatmul.bf16.gmra.mxu0 %v999
        %v1375 = vpop.f32.mrf.mxu0
        %v1376 = vadd.f32 0.0, %v1375
        %v1377 = vpop.f32.mrf.mxu0
        %v1378 = vadd.f32 0.0, %v1377
        %1379 = vmatmul.bf16.gmra.mxu0 %v1001
        %v1380 = vpop.f32.mrf.mxu0
        %v1381 = vadd.f32 0.0, %v1380
        %v1382 = vpop.f32.mrf.mxu0
        %v1383 = vadd.f32 0.0, %v1382
        %1384 = vmatmul.bf16.gmra.mxu0 %v1003
        %v1385 = vpop.f32.mrf.mxu0
        %v1386 = vadd.f32 0.0, %v1385
        %v1387 = vpop.f32.mrf.mxu0
        %v1388 = vadd.f32 0.0, %v1387
        %1389 = vmatmul.bf16.gmra.mxu0 %v1005
        %v1390 = vpop.f32.mrf.mxu0
        %v1391 = vadd.f32 0.0, %v1390
        %v1392 = vpop.f32.mrf.mxu0
        %v1393 = vadd.f32 0.0, %v1392
        %1394 = vmatmul.bf16.gmra.mxu0 %v1007
        %v1395 = vpop.f32.mrf.mxu0
        %v1396 = vadd.f32 0.0, %v1395
        %v1397 = vpop.f32.mrf.mxu0
        %v1398 = vadd.f32 0.0, %v1397
        %1399 = vmatmul.bf16.gmra.mxu0 %v1009
        %v1400 = vpop.f32.mrf.mxu0
        %v1401 = vadd.f32 0.0, %v1400
        %v1402 = vpop.f32.mrf.mxu0
        %v1403 = vadd.f32 0.0, %v1402
        %1404 = vmatmul.bf16.gmra.mxu0 %v1011
        %v1405 = vpop.f32.mrf.mxu0
        %v1406 = vadd.f32 0.0, %v1405
        %v1407 = vpop.f32.mrf.mxu0
        %v1408 = vadd.f32 0.0, %v1407
        %1409 = vmatmul.bf16.gmra.mxu0 %v1013
        %v1410 = vpop.f32.mrf.mxu0
        %v1411 = vadd.f32 0.0, %v1410
        %v1412 = vpop.f32.mrf.mxu0
        %v1413 = vadd.f32 0.0, %v1412
        %1414 = vmatmul.bf16.gmra.mxu0 %v1015
        %v1415 = vpop.f32.mrf.mxu0
        %v1416 = vadd.f32 0.0, %v1415
        %v1417 = vpop.f32.mrf.mxu0
        %v1418 = vadd.f32 0.0, %v1417
        %1419 = vmatmul.bf16.gmra.mxu0 %v1017
        %v1420 = vpop.f32.mrf.mxu0
        %v1421 = vadd.f32 0.0, %v1420
        %v1422 = vpop.f32.mrf.mxu0
        %v1423 = vadd.f32 0.0, %v1422
        %1424 = vmatmul.bf16.gmra.mxu0 %v1019
        %v1425 = vpop.f32.mrf.mxu0
        %v1426 = vadd.f32 0.0, %v1425
        %v1427 = vpop.f32.mrf.mxu0
        %v1428 = vadd.f32 0.0, %v1427
        %1429 = vdwg.mxu0
        %1430 = vmatpush.bf16.msra.mxu0 %v1290
        %1431 = vmatpush.bf16.msra.mxu0 %v1287
        %1432 = vmatpush.bf16.msra.mxu0 %v1284
        %1433 = vmatpush.bf16.msra.mxu0 %v1281
        %1434 = vmatpush.bf16.msra.mxu0 %v1278
        %1435 = vmatpush.bf16.msra.mxu0 %v1275
        %1436 = vmatpush.bf16.msra.mxu0 %v1272
        %1437 = vmatpush.bf16.msra.mxu0 %v1269
        %1438 = vmatmul.bf16.gmra.mxu0 %v990
        %v1439 = vpop.f32.mrf.mxu0
        %v1440 = vadd.f32 %v1351, %v1439
        %v1441 = vpop.f32.mrf.mxu0
        %v1442 = vadd.f32 %v1353, %v1441
        %1443 = vmatmul.bf16.gmra.mxu0 %v992
        %v1444 = vpop.f32.mrf.mxu0
        %v1445 = vadd.f32 %v1356, %v1444
        %v1446 = vpop.f32.mrf.mxu0
        %v1447 = vadd.f32 %v1358, %v1446
        %1448 = vmatmul.bf16.gmra.mxu0 %v994
        %v1449 = vpop.f32.mrf.mxu0
        %v1450 = vadd.f32 %v1361, %v1449
        %v1451 = vpop.f32.mrf.mxu0
        %v1452 = vadd.f32 %v1363, %v1451
        %1453 = vmatmul.bf16.gmra.mxu0 %v996
        %v1454 = vpop.f32.mrf.mxu0
        %v1455 = vadd.f32 %v1366, %v1454
        %v1456 = vpop.f32.mrf.mxu0
        %v1457 = vadd.f32 %v1368, %v1456
        %1458 = vmatmul.bf16.gmra.mxu0 %v998
        %v1459 = vpop.f32.mrf.mxu0
        %v1460 = vadd.f32 %v1371, %v1459
        %v1461 = vpop.f32.mrf.mxu0
        %v1462 = vadd.f32 %v1373, %v1461
        %1463 = vmatmul.bf16.gmra.mxu0 %v1000
        %v1464 = vpop.f32.mrf.mxu0
        %v1465 = vadd.f32 %v1376, %v1464
        %v1466 = vpop.f32.mrf.mxu0
        %v1467 = vadd.f32 %v1378, %v1466
        %1468 = vmatmul.bf16.gmra.mxu0 %v1002
        %v1469 = vpop.f32.mrf.mxu0
        %v1470 = vadd.f32 %v1381, %v1469
        %v1471 = vpop.f32.mrf.mxu0
        %v1472 = vadd.f32 %v1383, %v1471
        %1473 = vmatmul.bf16.gmra.mxu0 %v1004
        %v1474 = vpop.f32.mrf.mxu0
        %v1475 = vadd.f32 %v1386, %v1474
        %v1476 = vpop.f32.mrf.mxu0
        %v1477 = vadd.f32 %v1388, %v1476
        %1478 = vmatmul.bf16.gmra.mxu0 %v1006
        %v1479 = vpop.f32.mrf.mxu0
        %v1480 = vadd.f32 %v1391, %v1479
        %v1481 = vpop.f32.mrf.mxu0
        %v1482 = vadd.f32 %v1393, %v1481
        %1483 = vmatmul.bf16.gmra.mxu0 %v1008
        %v1484 = vpop.f32.mrf.mxu0
        %v1485 = vadd.f32 %v1396, %v1484
        %v1486 = vpop.f32.mrf.mxu0
        %v1487 = vadd.f32 %v1398, %v1486
        %1488 = vmatmul.bf16.gmra.mxu0 %v1010
        %v1489 = vpop.f32.mrf.mxu0
        %v1490 = vadd.f32 %v1401, %v1489
        %v1491 = vpop.f32.mrf.mxu0
        %v1492 = vadd.f32 %v1403, %v1491
        %1493 = vmatmul.bf16.gmra.mxu0 %v1012
        %v1494 = vpop.f32.mrf.mxu0
        %v1495 = vadd.f32 %v1406, %v1494
        %v1496 = vpop.f32.mrf.mxu0
        %v1497 = vadd.f32 %v1408, %v1496
        %1498 = vmatmul.bf16.gmra.mxu0 %v1014
        %v1499 = vpop.f32.mrf.mxu0
        %v1500 = vadd.f32 %v1411, %v1499
        %v1501 = vpop.f32.mrf.mxu0
        %v1502 = vadd.f32 %v1413, %v1501
        %1503 = vmatmul.bf16.gmra.mxu0 %v1016
        %v1504 = vpop.f32.mrf.mxu0
        %v1505 = vadd.f32 %v1416, %v1504
        %v1506 = vpop.f32.mrf.mxu0
        %v1507 = vadd.f32 %v1418, %v1506
        %1508 = vmatmul.bf16.gmra.mxu0 %v1018
        %v1509 = vpop.f32.mrf.mxu0
        %v1510 = vadd.f32 %v1421, %v1509
        %v1511 = vpop.f32.mrf.mxu0
        %v1512 = vadd.f32 %v1423, %v1511
        %1513 = vmatmul.bf16.gmra.mxu0 %v1020
        %v1514 = vpop.f32.mrf.mxu0
        %v1515 = vadd.f32 %v1426, %v1514
        %v1516 = vpop.f32.mrf.mxu0
        %v1517 = vadd.f32 %v1428, %v1516
        %1518 = vdwg.mxu0
        %1519 = vmatpush.bf16.msra.mxu0 %v1267
        %1520 = vmatpush.bf16.msra.mxu0 %v1264
        %1521 = vmatpush.bf16.msra.mxu0 %v1261
        %1522 = vmatpush.bf16.msra.mxu0 %v1258
        %1523 = vmatpush.bf16.msra.mxu0 %v1255
        %1524 = vmatpush.bf16.msra.mxu0 %v1252
        %1525 = vmatpush.bf16.msra.mxu0 %v1249
        %1526 = vmatpush.bf16.msra.mxu0 %v1246
        %1527 = vmatmul.bf16.gmra.mxu0 %v989
        %v1528 = vpop.f32.mrf.mxu0
        %v1529 = vadd.f32 0.0, %v1528
        %v1530 = vpop.f32.mrf.mxu0
        %v1531 = vadd.f32 0.0, %v1530
        %1532 = vmatmul.bf16.gmra.mxu0 %v991
        %v1533 = vpop.f32.mrf.mxu0
        %v1534 = vadd.f32 0.0, %v1533
        %v1535 = vpop.f32.mrf.mxu0
        %v1536 = vadd.f32 0.0, %v1535
        %1537 = vmatmul.bf16.gmra.mxu0 %v993
        %v1538 = vpop.f32.mrf.mxu0
        %v1539 = vadd.f32 0.0, %v1538
        %v1540 = vpop.f32.mrf.mxu0
        %v1541 = vadd.f32 0.0, %v1540
        %1542 = vmatmul.bf16.gmra.mxu0 %v995
        %v1543 = vpop.f32.mrf.mxu0
        %v1544 = vadd.f32 0.0, %v1543
        %v1545 = vpop.f32.mrf.mxu0
        %v1546 = vadd.f32 0.0, %v1545
        %1547 = vmatmul.bf16.gmra.mxu0 %v997
        %v1548 = vpop.f32.mrf.mxu0
        %v1549 = vadd.f32 0.0, %v1548
        %v1550 = vpop.f32.mrf.mxu0
        %v1551 = vadd.f32 0.0, %v1550
        %1552 = vmatmul.bf16.gmra.mxu0 %v999
        %v1553 = vpop.f32.mrf.mxu0
        %v1554 = vadd.f32 0.0, %v1553
        %v1555 = vpop.f32.mrf.mxu0
        %v1556 = vadd.f32 0.0, %v1555
        %1557 = vmatmul.bf16.gmra.mxu0 %v1001
        %v1558 = vpop.f32.mrf.mxu0
        %v1559 = vadd.f32 0.0, %v1558
        %v1560 = vpop.f32.mrf.mxu0
        %v1561 = vadd.f32 0.0, %v1560
        %1562 = vmatmul.bf16.gmra.mxu0 %v1003
        %v1563 = vpop.f32.mrf.mxu0
        %v1564 = vadd.f32 0.0, %v1563
        %v1565 = vpop.f32.mrf.mxu0
        %v1566 = vadd.f32 0.0, %v1565
        %1567 = vmatmul.bf16.gmra.mxu0 %v1005
        %v1568 = vpop.f32.mrf.mxu0
        %v1569 = vadd.f32 0.0, %v1568
        %v1570 = vpop.f32.mrf.mxu0
        %v1571 = vadd.f32 0.0, %v1570
        %1572 = vmatmul.bf16.gmra.mxu0 %v1007
        %v1573 = vpop.f32.mrf.mxu0
        %v1574 = vadd.f32 0.0, %v1573
        %v1575 = vpop.f32.mrf.mxu0
        %v1576 = vadd.f32 0.0, %v1575
        %1577 = vmatmul.bf16.gmra.mxu0 %v1009
        %v1578 = vpop.f32.mrf.mxu0
        %v1579 = vadd.f32 0.0, %v1578
        %v1580 = vpop.f32.mrf.mxu0
        %v1581 = vadd.f32 0.0, %v1580
        %1582 = vmatmul.bf16.gmra.mxu0 %v1011
        %v1583 = vpop.f32.mrf.mxu0
        %v1584 = vadd.f32 0.0, %v1583
        %v1585 = vpop.f32.mrf.mxu0
        %v1586 = vadd.f32 0.0, %v1585
        %1587 = vmatmul.bf16.gmra.mxu0 %v1013
        %v1588 = vpop.f32.mrf.mxu0
        %v1589 = vadd.f32 0.0, %v1588
        %v1590 = vpop.f32.mrf.mxu0
        %v1591 = vadd.f32 0.0, %v1590
        %1592 = vmatmul.bf16.gmra.mxu0 %v1015
        %v1593 = vpop.f32.mrf.mxu0
        %v1594 = vadd.f32 0.0, %v1593
        %v1595 = vpop.f32.mrf.mxu0
        %v1596 = vadd.f32 0.0, %v1595
        %1597 = vmatmul.bf16.gmra.mxu0 %v1017
        %v1598 = vpop.f32.mrf.mxu0
        %v1599 = vadd.f32 0.0, %v1598
        %v1600 = vpop.f32.mrf.mxu0
        %v1601 = vadd.f32 0.0, %v1600
        %1602 = vmatmul.bf16.gmra.mxu0 %v1019
        %v1603 = vpop.f32.mrf.mxu0
        %v1604 = vadd.f32 0.0, %v1603
        %v1605 = vpop.f32.mrf.mxu0
        %v1606 = vadd.f32 0.0, %v1605
        %1607 = vdwg.mxu0
        %1608 = vmatpush.bf16.msra.mxu0 %v1291
        %1609 = vmatpush.bf16.msra.mxu0 %v1288
        %1610 = vmatpush.bf16.msra.mxu0 %v1285
        %1611 = vmatpush.bf16.msra.mxu0 %v1282
        %1612 = vmatpush.bf16.msra.mxu0 %v1279
        %1613 = vmatpush.bf16.msra.mxu0 %v1276
        %1614 = vmatpush.bf16.msra.mxu0 %v1273
        %1615 = vmatpush.bf16.msra.mxu0 %v1270
        %1616 = vmatmul.bf16.gmra.mxu0 %v990
        %v1617 = vpop.f32.mrf.mxu0
        %v1618 = vadd.f32 %v1529, %v1617
        %v1619 = vpop.f32.mrf.mxu0
        %v1620 = vadd.f32 %v1531, %v1619
        %1621 = vmatmul.bf16.gmra.mxu0 %v992
        %v1622 = vpop.f32.mrf.mxu0
        %v1623 = vadd.f32 %v1534, %v1622
        %v1624 = vpop.f32.mrf.mxu0
        %v1625 = vadd.f32 %v1536, %v1624
        %1626 = vmatmul.bf16.gmra.mxu0 %v994
        %v1627 = vpop.f32.mrf.mxu0
        %v1628 = vadd.f32 %v1539, %v1627
        %v1629 = vpop.f32.mrf.mxu0
        %v1630 = vadd.f32 %v1541, %v1629
        %1631 = vmatmul.bf16.gmra.mxu0 %v996
        %v1632 = vpop.f32.mrf.mxu0
        %v1633 = vadd.f32 %v1544, %v1632
        %v1634 = vpop.f32.mrf.mxu0
        %v1635 = vadd.f32 %v1546, %v1634
        %1636 = vmatmul.bf16.gmra.mxu0 %v998
        %v1637 = vpop.f32.mrf.mxu0
        %v1638 = vadd.f32 %v1549, %v1637
        %v1639 = vpop.f32.mrf.mxu0
        %v1640 = vadd.f32 %v1551, %v1639
        %1641 = vmatmul.bf16.gmra.mxu0 %v1000
        %v1642 = vpop.f32.mrf.mxu0
        %v1643 = vadd.f32 %v1554, %v1642
        %v1644 = vpop.f32.mrf.mxu0
        %v1645 = vadd.f32 %v1556, %v1644
        %1646 = vmatmul.bf16.gmra.mxu0 %v1002
        %v1647 = vpop.f32.mrf.mxu0
        %v1648 = vadd.f32 %v1559, %v1647
        %v1649 = vpop.f32.mrf.mxu0
        %v1650 = vadd.f32 %v1561, %v1649
        %1651 = vmatmul.bf16.gmra.mxu0 %v1004
        %v1652 = vpop.f32.mrf.mxu0
        %v1653 = vadd.f32 %v1564, %v1652
        %v1654 = vpop.f32.mrf.mxu0
        %v1655 = vadd.f32 %v1566, %v1654
        %1656 = vmatmul.bf16.gmra.mxu0 %v1006
        %v1657 = vpop.f32.mrf.mxu0
        %v1658 = vadd.f32 %v1569, %v1657
        %v1659 = vpop.f32.mrf.mxu0
        %v1660 = vadd.f32 %v1571, %v1659
        %1661 = vmatmul.bf16.gmra.mxu0 %v1008
        %v1662 = vpop.f32.mrf.mxu0
        %v1663 = vadd.f32 %v1574, %v1662
        %v1664 = vpop.f32.mrf.mxu0
        %v1665 = vadd.f32 %v1576, %v1664
        %1666 = vmatmul.bf16.gmra.mxu0 %v1010
        %v1667 = vpop.f32.mrf.mxu0
        %v1668 = vadd.f32 %v1579, %v1667
        %v1669 = vpop.f32.mrf.mxu0
        %v1670 = vadd.f32 %v1581, %v1669
        %1671 = vmatmul.bf16.gmra.mxu0 %v1012
        %v1672 = vpop.f32.mrf.mxu0
        %v1673 = vadd.f32 %v1584, %v1672
        %v1674 = vpop.f32.mrf.mxu0
        %v1675 = vadd.f32 %v1586, %v1674
        %1676 = vmatmul.bf16.gmra.mxu0 %v1014
        %v1677 = vpop.f32.mrf.mxu0
        %v1678 = vadd.f32 %v1589, %v1677
        %v1679 = vpop.f32.mrf.mxu0
        %v1680 = vadd.f32 %v1591, %v1679
        %1681 = vmatmul.bf16.gmra.mxu0 %v1016
        %v1682 = vpop.f32.mrf.mxu0
        %v1683 = vadd.f32 %v1594, %v1682
        %v1684 = vpop.f32.mrf.mxu0
        %v1685 = vadd.f32 %v1596, %v1684
        %1686 = vmatmul.bf16.gmra.mxu0 %v1018
        %v1687 = vpop.f32.mrf.mxu0
        %v1688 = vadd.f32 %v1599, %v1687
        %v1689 = vpop.f32.mrf.mxu0
        %v1690 = vadd.f32 %v1601, %v1689
        %1691 = vmatmul.bf16.gmra.mxu0 %v1020
        %v1692 = vpop.f32.mrf.mxu0
        %v1693 = vadd.f32 %v1604, %v1692
        %v1694 = vpop.f32.mrf.mxu0
        %v1695 = vadd.f32 %v1606, %v1694
        %1696 = vdwg.mxu0
        %1697 = vmatpush.bf16.msra.mxu0 %v1268
        %1698 = vmatpush.bf16.msra.mxu0 %v1265
        %1699 = vmatpush.bf16.msra.mxu0 %v1262
        %1700 = vmatpush.bf16.msra.mxu0 %v1259
        %1701 = vmatpush.bf16.msra.mxu0 %v1256
        %1702 = vmatpush.bf16.msra.mxu0 %v1253
        %1703 = vmatpush.bf16.msra.mxu0 %v1250
        %1704 = vmatpush.bf16.msra.mxu0 %v1247
        %1705 = vmatmul.bf16.gmra.mxu0 %v989
        %v1706 = vpop.f32.mrf.mxu0
        %v1707 = vadd.f32 0.0, %v1706
        %v1708 = vpop.f32.mrf.mxu0
        %v1709 = vadd.f32 0.0, %v1708
        %1710 = vmatmul.bf16.gmra.mxu0 %v991
        %v1711 = vpop.f32.mrf.mxu0
        %v1712 = vadd.f32 0.0, %v1711
        %v1713 = vpop.f32.mrf.mxu0
        %v1714 = vadd.f32 0.0, %v1713
        %1715 = vmatmul.bf16.gmra.mxu0 %v993
        %v1716 = vpop.f32.mrf.mxu0
        %v1717 = vadd.f32 0.0, %v1716
        %v1718 = vpop.f32.mrf.mxu0
        %v1719 = vadd.f32 0.0, %v1718
        %1720 = vmatmul.bf16.gmra.mxu0 %v995
        %v1721 = vpop.f32.mrf.mxu0
        %v1722 = vadd.f32 0.0, %v1721
        %v1723 = vpop.f32.mrf.mxu0
        %v1724 = vadd.f32 0.0, %v1723
        %1725 = vmatmul.bf16.gmra.mxu0 %v997
        %v1726 = vpop.f32.mrf.mxu0
        %v1727 = vadd.f32 0.0, %v1726
        %v1728 = vpop.f32.mrf.mxu0
        %v1729 = vadd.f32 0.0, %v1728
        %1730 = vmatmul.bf16.gmra.mxu0 %v999
        %v1731 = vpop.f32.mrf.mxu0
        %v1732 = vadd.f32 0.0, %v1731
        %v1733 = vpop.f32.mrf.mxu0
        %v1734 = vadd.f32 0.0, %v1733
        %1735 = vmatmul.bf16.gmra.mxu0 %v1001
        %v1736 = vpop.f32.mrf.mxu0
        %v1737 = vadd.f32 0.0, %v1736
        %v1738 = vpop.f32.mrf.mxu0
        %v1739 = vadd.f32 0.0, %v1738
        %1740 = vmatmul.bf16.gmra.mxu0 %v1003
        %v1741 = vpop.f32.mrf.mxu0
        %v1742 = vadd.f32 0.0, %v1741
        %v1743 = vpop.f32.mrf.mxu0
        %v1744 = vadd.f32 0.0, %v1743
        %1745 = vmatmul.bf16.gmra.mxu0 %v1005
        %v1746 = vpop.f32.mrf.mxu0
        %v1747 = vadd.f32 0.0, %v1746
        %v1748 = vpop.f32.mrf.mxu0
        %v1749 = vadd.f32 0.0, %v1748
        %1750 = vmatmul.bf16.gmra.mxu0 %v1007
        %v1751 = vpop.f32.mrf.mxu0
        %v1752 = vadd.f32 0.0, %v1751
        %v1753 = vpop.f32.mrf.mxu0
        %v1754 = vadd.f32 0.0, %v1753
        %1755 = vmatmul.bf16.gmra.mxu0 %v1009
        %v1756 = vpop.f32.mrf.mxu0
        %v1757 = vadd.f32 0.0, %v1756
        %v1758 = vpop.f32.mrf.mxu0
        %v1759 = vadd.f32 0.0, %v1758
        %1760 = vmatmul.bf16.gmra.mxu0 %v1011
        %v1761 = vpop.f32.mrf.mxu0
        %v1762 = vadd.f32 0.0, %v1761
        %v1763 = vpop.f32.mrf.mxu0
        %v1764 = vadd.f32 0.0, %v1763
        %1765 = vmatmul.bf16.gmra.mxu0 %v1013
        %v1766 = vpop.f32.mrf.mxu0
        %v1767 = vadd.f32 0.0, %v1766
        %v1768 = vpop.f32.mrf.mxu0
        %v1769 = vadd.f32 0.0, %v1768
        %1770 = vmatmul.bf16.gmra.mxu0 %v1015
        %v1771 = vpop.f32.mrf.mxu0
        %v1772 = vadd.f32 0.0, %v1771
        %v1773 = vpop.f32.mrf.mxu0
        %v1774 = vadd.f32 0.0, %v1773
        %1775 = vmatmul.bf16.gmra.mxu0 %v1017
        %v1776 = vpop.f32.mrf.mxu0
        %v1777 = vadd.f32 0.0, %v1776
        %v1778 = vpop.f32.mrf.mxu0
        %v1779 = vadd.f32 0.0, %v1778
        %1780 = vmatmul.bf16.gmra.mxu0 %v1019
        %v1781 = vpop.f32.mrf.mxu0
        %v1782 = vadd.f32 0.0, %v1781
        %v1783 = vpop.f32.mrf.mxu0
        %v1784 = vadd.f32 0.0, %v1783
        %1785 = vdwg.mxu0
        %1786 = vmatpush.bf16.msra.mxu0 %v1292
        %1787 = vmatpush.bf16.msra.mxu0 %v1289
        %1788 = vmatpush.bf16.msra.mxu0 %v1286
        %1789 = vmatpush.bf16.msra.mxu0 %v1283
        %1790 = vmatpush.bf16.msra.mxu0 %v1280
        %1791 = vmatpush.bf16.msra.mxu0 %v1277
        %1792 = vmatpush.bf16.msra.mxu0 %v1274
        %1793 = vmatpush.bf16.msra.mxu0 %v1271
        %1794 = vmatmul.bf16.gmra.mxu0 %v990
        %v1795 = vpop.f32.mrf.mxu0
        %v1796 = vadd.f32 %v1707, %v1795
        %v1797 = vpop.f32.mrf.mxu0
        %v1798 = vadd.f32 %v1709, %v1797
        %1799 = vmatmul.bf16.gmra.mxu0 %v992
        %v1800 = vpop.f32.mrf.mxu0
        %v1801 = vadd.f32 %v1712, %v1800
        %v1802 = vpop.f32.mrf.mxu0
        %v1803 = vadd.f32 %v1714, %v1802
        %1804 = vmatmul.bf16.gmra.mxu0 %v994
        %v1805 = vpop.f32.mrf.mxu0
        %v1806 = vadd.f32 %v1717, %v1805
        %v1807 = vpop.f32.mrf.mxu0
        %v1808 = vadd.f32 %v1719, %v1807
        %1809 = vmatmul.bf16.gmra.mxu0 %v996
        %v1810 = vpop.f32.mrf.mxu0
        %v1811 = vadd.f32 %v1722, %v1810
        %v1812 = vpop.f32.mrf.mxu0
        %v1813 = vadd.f32 %v1724, %v1812
        %1814 = vmatmul.bf16.gmra.mxu0 %v998
        %v1815 = vpop.f32.mrf.mxu0
        %v1816 = vadd.f32 %v1727, %v1815
        %v1817 = vpop.f32.mrf.mxu0
        %v1818 = vadd.f32 %v1729, %v1817
        %1819 = vmatmul.bf16.gmra.mxu0 %v1000
        %v1820 = vpop.f32.mrf.mxu0
        %v1821 = vadd.f32 %v1732, %v1820
        %v1822 = vpop.f32.mrf.mxu0
        %v1823 = vadd.f32 %v1734, %v1822
        %1824 = vmatmul.bf16.gmra.mxu0 %v1002
        %v1825 = vpop.f32.mrf.mxu0
        %v1826 = vadd.f32 %v1737, %v1825
        %v1827 = vpop.f32.mrf.mxu0
        %v1828 = vadd.f32 %v1739, %v1827
        %1829 = vmatmul.bf16.gmra.mxu0 %v1004
        %v1830 = vpop.f32.mrf.mxu0
        %v1831 = vadd.f32 %v1742, %v1830
        %v1832 = vpop.f32.mrf.mxu0
        %v1833 = vadd.f32 %v1744, %v1832
        %1834 = vmatmul.bf16.gmra.mxu0 %v1006
        %v1835 = vpop.f32.mrf.mxu0
        %v1836 = vadd.f32 %v1747, %v1835
        %v1837 = vpop.f32.mrf.mxu0
        %v1838 = vadd.f32 %v1749, %v1837
        %1839 = vmatmul.bf16.gmra.mxu0 %v1008
        %v1840 = vpop.f32.mrf.mxu0
        %v1841 = vadd.f32 %v1752, %v1840
        %v1842 = vpop.f32.mrf.mxu0
        %v1843 = vadd.f32 %v1754, %v1842
        %1844 = vmatmul.bf16.gmra.mxu0 %v1010
        %v1845 = vpop.f32.mrf.mxu0
        %v1846 = vadd.f32 %v1757, %v1845
        %v1847 = vpop.f32.mrf.mxu0
        %v1848 = vadd.f32 %v1759, %v1847
        %1849 = vmatmul.bf16.gmra.mxu0 %v1012
        %v1850 = vpop.f32.mrf.mxu0
        %v1851 = vadd.f32 %v1762, %v1850
        %v1852 = vpop.f32.mrf.mxu0
        %v1853 = vadd.f32 %v1764, %v1852
        %1854 = vmatmul.bf16.gmra.mxu0 %v1014
        %v1855 = vpop.f32.mrf.mxu0
        %v1856 = vadd.f32 %v1767, %v1855
        %v1857 = vpop.f32.mrf.mxu0
        %v1858 = vadd.f32 %v1769, %v1857
        %1859 = vmatmul.bf16.gmra.mxu0 %v1016
        %v1860 = vpop.f32.mrf.mxu0
        %v1861 = vadd.f32 %v1772, %v1860
        %v1862 = vpop.f32.mrf.mxu0
        %v1863 = vadd.f32 %v1774, %v1862
        %1864 = vmatmul.bf16.gmra.mxu0 %v1018
        %v1865 = vpop.f32.mrf.mxu0
        %v1866 = vadd.f32 %v1777, %v1865
        %v1867 = vpop.f32.mrf.mxu0
        %v1868 = vadd.f32 %v1779, %v1867
        %1869 = vmatmul.bf16.gmra.mxu0 %v1020
        %v1870 = vpop.f32.mrf.mxu0
        %v1871 = vadd.f32 %v1782, %v1870
        %v1872 = vpop.f32.mrf.mxu0
        %v1873 = vadd.f32 %v1784, %v1872
        %1874 = vdwg.mxu0
        %vm1875 = vcmask 326656
        %v1876 = vsel %vm1875, %v1440, -inf
        %1877 = vmax.xlane.f32.xlu0 %v1876
        %v1878 = vpop.xlane.xlu0 %1877
        %v1879 = vsel %vm1875, %v1442, -inf
        %1880 = vmax.xlane.f32.xlu0 %v1879
        %v1881 = vpop.xlane.xlu0 %1880
        %v1882 = vsel %vm1875, %v1445, -inf
        %1883 = vmax.xlane.f32.xlu0 %v1882
        %v1884 = vpop.xlane.xlu0 %1883
        %v1885 = vsel %vm1875, %v1447, -inf
        %1886 = vmax.xlane.f32.xlu0 %v1885
        %v1887 = vpop.xlane.xlu0 %1886
        %v1888 = vsel %vm1875, %v1450, -inf
        %1889 = vmax.xlane.f32.xlu0 %v1888
        %v1890 = vpop.xlane.xlu0 %1889
        %v1891 = vsel %vm1875, %v1452, -inf
        %1892 = vmax.xlane.f32.xlu0 %v1891
        %v1893 = vpop.xlane.xlu0 %1892
        %v1894 = vsel %vm1875, %v1455, -inf
        %1895 = vmax.xlane.f32.xlu0 %v1894
        %v1896 = vpop.xlane.xlu0 %1895
        %v1897 = vsel %vm1875, %v1457, -inf
        %1898 = vmax.xlane.f32.xlu0 %v1897
        %v1899 = vpop.xlane.xlu0 %1898
        %v1900 = vsel %vm1875, %v1460, -inf
        %1901 = vmax.xlane.f32.xlu0 %v1900
        %v1902 = vpop.xlane.xlu0 %1901
        %v1903 = vsel %vm1875, %v1462, -inf
        %1904 = vmax.xlane.f32.xlu0 %v1903
        %v1905 = vpop.xlane.xlu0 %1904
        %v1906 = vsel %vm1875, %v1465, -inf
        %1907 = vmax.xlane.f32.xlu0 %v1906
        %v1908 = vpop.xlane.xlu0 %1907
        %v1909 = vsel %vm1875, %v1467, -inf
        %1910 = vmax.xlane.f32.xlu0 %v1909
        %v1911 = vpop.xlane.xlu0 %1910
        %v1912 = vsel %vm1875, %v1470, -inf
        %1913 = vmax.xlane.f32.xlu0 %v1912
        %v1914 = vpop.xlane.xlu0 %1913
        %v1915 = vsel %vm1875, %v1472, -inf
        %1916 = vmax.xlane.f32.xlu0 %v1915
        %v1917 = vpop.xlane.xlu0 %1916
        %v1918 = vsel %vm1875, %v1475, -inf
        %1919 = vmax.xlane.f32.xlu0 %v1918
        %v1920 = vpop.xlane.xlu0 %1919
        %v1921 = vsel %vm1875, %v1477, -inf
        %1922 = vmax.xlane.f32.xlu0 %v1921
        %v1923 = vpop.xlane.xlu0 %1922
        %v1924 = vsel %vm1875, %v1480, -inf
        %1925 = vmax.xlane.f32.xlu0 %v1924
        %v1926 = vpop.xlane.xlu0 %1925
        %v1927 = vsel %vm1875, %v1482, -inf
        %1928 = vmax.xlane.f32.xlu0 %v1927
        %v1929 = vpop.xlane.xlu0 %1928
        %v1930 = vsel %vm1875, %v1485, -inf
        %1931 = vmax.xlane.f32.xlu0 %v1930
        %v1932 = vpop.xlane.xlu0 %1931
        %v1933 = vsel %vm1875, %v1487, -inf
        %1934 = vmax.xlane.f32.xlu0 %v1933
        %v1935 = vpop.xlane.xlu0 %1934
        %v1936 = vsel %vm1875, %v1490, -inf
        %1937 = vmax.xlane.f32.xlu0 %v1936
        %v1938 = vpop.xlane.xlu0 %1937
        %v1939 = vsel %vm1875, %v1492, -inf
        %1940 = vmax.xlane.f32.xlu0 %v1939
        %v1941 = vpop.xlane.xlu0 %1940
        %v1942 = vsel %vm1875, %v1495, -inf
        %1943 = vmax.xlane.f32.xlu0 %v1942
        %v1944 = vpop.xlane.xlu0 %1943
        %v1945 = vsel %vm1875, %v1497, -inf
        %1946 = vmax.xlane.f32.xlu0 %v1945
        %v1947 = vpop.xlane.xlu0 %1946
        %v1948 = vsel %vm1875, %v1500, -inf
        %1949 = vmax.xlane.f32.xlu0 %v1948
        %v1950 = vpop.xlane.xlu0 %1949
        %v1951 = vsel %vm1875, %v1502, -inf
        %1952 = vmax.xlane.f32.xlu0 %v1951
        %v1953 = vpop.xlane.xlu0 %1952
        %v1954 = vsel %vm1875, %v1505, -inf
        %1955 = vmax.xlane.f32.xlu0 %v1954
        %v1956 = vpop.xlane.xlu0 %1955
        %v1957 = vsel %vm1875, %v1507, -inf
        %1958 = vmax.xlane.f32.xlu0 %v1957
        %v1959 = vpop.xlane.xlu0 %1958
        %v1960 = vsel %vm1875, %v1510, -inf
        %1961 = vmax.xlane.f32.xlu0 %v1960
        %v1962 = vpop.xlane.xlu0 %1961
        %v1963 = vsel %vm1875, %v1512, -inf
        %1964 = vmax.xlane.f32.xlu0 %v1963
        %v1965 = vpop.xlane.xlu0 %1964
        %v1966 = vsel %vm1875, %v1515, -inf
        %1967 = vmax.xlane.f32.xlu0 %v1966
        %v1968 = vpop.xlane.xlu0 %1967
        %v1969 = vsel %vm1875, %v1517, -inf
        %1970 = vmax.xlane.f32.xlu0 %v1969
        %v1971 = vpop.xlane.xlu0 %1970
        %vm1972 = vcmask 777536
        %v1973 = vsel %vm1972, %v1440, -inf
        %1974 = vmax.xlane.f32.xlu0 %v1973
        %v1975 = vpop.xlane.xlu0 %1974
        %v1976 = vsel %vm1972, %v1442, -inf
        %1977 = vmax.xlane.f32.xlu0 %v1976
        %v1978 = vpop.xlane.xlu0 %1977
        %v1979 = vsel %vm1972, %v1445, -inf
        %1980 = vmax.xlane.f32.xlu0 %v1979
        %v1981 = vpop.xlane.xlu0 %1980
        %v1982 = vsel %vm1972, %v1447, -inf
        %1983 = vmax.xlane.f32.xlu0 %v1982
        %v1984 = vpop.xlane.xlu0 %1983
        %v1985 = vsel %vm1972, %v1450, -inf
        %1986 = vmax.xlane.f32.xlu0 %v1985
        %v1987 = vpop.xlane.xlu0 %1986
        %v1988 = vsel %vm1972, %v1452, -inf
        %1989 = vmax.xlane.f32.xlu0 %v1988
        %v1990 = vpop.xlane.xlu0 %1989
        %v1991 = vsel %vm1972, %v1455, -inf
        %1992 = vmax.xlane.f32.xlu0 %v1991
        %v1993 = vpop.xlane.xlu0 %1992
        %v1994 = vsel %vm1972, %v1457, -inf
        %1995 = vmax.xlane.f32.xlu0 %v1994
        %v1996 = vpop.xlane.xlu0 %1995
        %v1997 = vsel %vm1972, %v1460, -inf
        %1998 = vmax.xlane.f32.xlu0 %v1997
        %v1999 = vpop.xlane.xlu0 %1998
        %v2000 = vsel %vm1972, %v1462, -inf
        %2001 = vmax.xlane.f32.xlu0 %v2000
        %v2002 = vpop.xlane.xlu0 %2001
        %v2003 = vsel %vm1972, %v1465, -inf
        %2004 = vmax.xlane.f32.xlu0 %v2003
        %v2005 = vpop.xlane.xlu0 %2004
        %v2006 = vsel %vm1972, %v1467, -inf
        %2007 = vmax.xlane.f32.xlu0 %v2006
        %v2008 = vpop.xlane.xlu0 %2007
        %v2009 = vsel %vm1972, %v1470, -inf
        %2010 = vmax.xlane.f32.xlu0 %v2009
        %v2011 = vpop.xlane.xlu0 %2010
        %v2012 = vsel %vm1972, %v1472, -inf
        %2013 = vmax.xlane.f32.xlu0 %v2012
        %v2014 = vpop.xlane.xlu0 %2013
        %v2015 = vsel %vm1972, %v1475, -inf
        %2016 = vmax.xlane.f32.xlu0 %v2015
        %v2017 = vpop.xlane.xlu0 %2016
        %v2018 = vsel %vm1972, %v1477, -inf
        %2019 = vmax.xlane.f32.xlu0 %v2018
        %v2020 = vpop.xlane.xlu0 %2019
        %v2021 = vsel %vm1972, %v1480, -inf
        %2022 = vmax.xlane.f32.xlu0 %v2021
        %v2023 = vpop.xlane.xlu0 %2022
        %v2024 = vsel %vm1972, %v1482, -inf
        %2025 = vmax.xlane.f32.xlu0 %v2024
        %v2026 = vpop.xlane.xlu0 %2025
        %v2027 = vsel %vm1972, %v1485, -inf
        %2028 = vmax.xlane.f32.xlu0 %v2027
        %v2029 = vpop.xlane.xlu0 %2028
        %v2030 = vsel %vm1972, %v1487, -inf
        %2031 = vmax.xlane.f32.xlu0 %v2030
        %v2032 = vpop.xlane.xlu0 %2031
        %v2033 = vsel %vm1972, %v1490, -inf
        %2034 = vmax.xlane.f32.xlu0 %v2033
        %v2035 = vpop.xlane.xlu0 %2034
        %v2036 = vsel %vm1972, %v1492, -inf
        %2037 = vmax.xlane.f32.xlu0 %v2036
        %v2038 = vpop.xlane.xlu0 %2037
        %v2039 = vsel %vm1972, %v1495, -inf
        %2040 = vmax.xlane.f32.xlu0 %v2039
        %v2041 = vpop.xlane.xlu0 %2040
        %v2042 = vsel %vm1972, %v1497, -inf
        %2043 = vmax.xlane.f32.xlu0 %v2042
        %v2044 = vpop.xlane.xlu0 %2043
        %v2045 = vsel %vm1972, %v1500, -inf
        %2046 = vmax.xlane.f32.xlu0 %v2045
        %v2047 = vpop.xlane.xlu0 %2046
        %v2048 = vsel %vm1972, %v1502, -inf
        %2049 = vmax.xlane.f32.xlu0 %v2048
        %v2050 = vpop.xlane.xlu0 %2049
        %v2051 = vsel %vm1972, %v1505, -inf
        %2052 = vmax.xlane.f32.xlu0 %v2051
        %v2053 = vpop.xlane.xlu0 %2052
        %v2054 = vsel %vm1972, %v1507, -inf
        %2055 = vmax.xlane.f32.xlu0 %v2054
        %v2056 = vpop.xlane.xlu0 %2055
        %v2057 = vsel %vm1972, %v1510, -inf
        %2058 = vmax.xlane.f32.xlu0 %v2057
        %v2059 = vpop.xlane.xlu0 %2058
        %v2060 = vsel %vm1972, %v1512, -inf
        %2061 = vmax.xlane.f32.xlu0 %v2060
        %v2062 = vpop.xlane.xlu0 %2061
        %v2063 = vsel %vm1972, %v1515, -inf
        %2064 = vmax.xlane.f32.xlu0 %v2063
        %v2065 = vpop.xlane.xlu0 %2064
        %v2066 = vsel %vm1972, %v1517, -inf
        %2067 = vmax.xlane.f32.xlu0 %v2066
        %v2068 = vpop.xlane.xlu0 %2067
        %vm2069 = vcmask 1048312
        %v2070 = vsel %vm2069, %v1440, -inf
        %vm2071 = vcmask 179200
        %v2072 = vsel %vm2071, %v1618, -inf
        %v2073 = vmax.f32 %v2070, %v2072
        %2074 = vmax.xlane.f32.xlu0 %v2073
        %v2075 = vpop.xlane.xlu0 %2074
        %v2076 = vsel %vm2069, %v1442, -inf
        %v2077 = vsel %vm2071, %v1620, -inf
        %v2078 = vmax.f32 %v2076, %v2077
        %2079 = vmax.xlane.f32.xlu0 %v2078
        %v2080 = vpop.xlane.xlu0 %2079
        %v2081 = vsel %vm2069, %v1445, -inf
        %v2082 = vsel %vm2071, %v1623, -inf
        %v2083 = vmax.f32 %v2081, %v2082
        %2084 = vmax.xlane.f32.xlu0 %v2083
        %v2085 = vpop.xlane.xlu0 %2084
        %v2086 = vsel %vm2069, %v1447, -inf
        %v2087 = vsel %vm2071, %v1625, -inf
        %v2088 = vmax.f32 %v2086, %v2087
        %2089 = vmax.xlane.f32.xlu0 %v2088
        %v2090 = vpop.xlane.xlu0 %2089
        %v2091 = vsel %vm2069, %v1450, -inf
        %v2092 = vsel %vm2071, %v1628, -inf
        %v2093 = vmax.f32 %v2091, %v2092
        %2094 = vmax.xlane.f32.xlu0 %v2093
        %v2095 = vpop.xlane.xlu0 %2094
        %v2096 = vsel %vm2069, %v1452, -inf
        %v2097 = vsel %vm2071, %v1630, -inf
        %v2098 = vmax.f32 %v2096, %v2097
        %2099 = vmax.xlane.f32.xlu0 %v2098
        %v2100 = vpop.xlane.xlu0 %2099
        %v2101 = vsel %vm2069, %v1455, -inf
        %v2102 = vsel %vm2071, %v1633, -inf
        %v2103 = vmax.f32 %v2101, %v2102
        %2104 = vmax.xlane.f32.xlu0 %v2103
        %v2105 = vpop.xlane.xlu0 %2104
        %v2106 = vsel %vm2069, %v1457, -inf
        %v2107 = vsel %vm2071, %v1635, -inf
        %v2108 = vmax.f32 %v2106, %v2107
        %2109 = vmax.xlane.f32.xlu0 %v2108
        %v2110 = vpop.xlane.xlu0 %2109
        %v2111 = vsel %vm2069, %v1460, -inf
        %v2112 = vsel %vm2071, %v1638, -inf
        %v2113 = vmax.f32 %v2111, %v2112
        %2114 = vmax.xlane.f32.xlu0 %v2113
        %v2115 = vpop.xlane.xlu0 %2114
        %v2116 = vsel %vm2069, %v1462, -inf
        %v2117 = vsel %vm2071, %v1640, -inf
        %v2118 = vmax.f32 %v2116, %v2117
        %2119 = vmax.xlane.f32.xlu0 %v2118
        %v2120 = vpop.xlane.xlu0 %2119
        %v2121 = vsel %vm2069, %v1465, -inf
        %v2122 = vsel %vm2071, %v1643, -inf
        %v2123 = vmax.f32 %v2121, %v2122
        %2124 = vmax.xlane.f32.xlu0 %v2123
        %v2125 = vpop.xlane.xlu0 %2124
        %v2126 = vsel %vm2069, %v1467, -inf
        %v2127 = vsel %vm2071, %v1645, -inf
        %v2128 = vmax.f32 %v2126, %v2127
        %2129 = vmax.xlane.f32.xlu0 %v2128
        %v2130 = vpop.xlane.xlu0 %2129
        %v2131 = vsel %vm2069, %v1470, -inf
        %v2132 = vsel %vm2071, %v1648, -inf
        %v2133 = vmax.f32 %v2131, %v2132
        %2134 = vmax.xlane.f32.xlu0 %v2133
        %v2135 = vpop.xlane.xlu0 %2134
        %v2136 = vsel %vm2069, %v1472, -inf
        %v2137 = vsel %vm2071, %v1650, -inf
        %v2138 = vmax.f32 %v2136, %v2137
        %2139 = vmax.xlane.f32.xlu0 %v2138
        %v2140 = vpop.xlane.xlu0 %2139
        %v2141 = vsel %vm2069, %v1475, -inf
        %v2142 = vsel %vm2071, %v1653, -inf
        %v2143 = vmax.f32 %v2141, %v2142
        %2144 = vmax.xlane.f32.xlu0 %v2143
        %v2145 = vpop.xlane.xlu0 %2144
        %v2146 = vsel %vm2069, %v1477, -inf
        %v2147 = vsel %vm2071, %v1655, -inf
        %v2148 = vmax.f32 %v2146, %v2147
        %2149 = vmax.xlane.f32.xlu0 %v2148
        %v2150 = vpop.xlane.xlu0 %2149
        %v2151 = vsel %vm2069, %v1480, -inf
        %v2152 = vsel %vm2071, %v1658, -inf
        %v2153 = vmax.f32 %v2151, %v2152
        %2154 = vmax.xlane.f32.xlu0 %v2153
        %v2155 = vpop.xlane.xlu0 %2154
        %v2156 = vsel %vm2069, %v1482, -inf
        %v2157 = vsel %vm2071, %v1660, -inf
        %v2158 = vmax.f32 %v2156, %v2157
        %2159 = vmax.xlane.f32.xlu0 %v2158
        %v2160 = vpop.xlane.xlu0 %2159
        %v2161 = vsel %vm2069, %v1485, -inf
        %v2162 = vsel %vm2071, %v1663, -inf
        %v2163 = vmax.f32 %v2161, %v2162
        %2164 = vmax.xlane.f32.xlu0 %v2163
        %v2165 = vpop.xlane.xlu0 %2164
        %v2166 = vsel %vm2069, %v1487, -inf
        %v2167 = vsel %vm2071, %v1665, -inf
        %v2168 = vmax.f32 %v2166, %v2167
        %2169 = vmax.xlane.f32.xlu0 %v2168
        %v2170 = vpop.xlane.xlu0 %2169
        %v2171 = vsel %vm2069, %v1490, -inf
        %v2172 = vsel %vm2071, %v1668, -inf
        %v2173 = vmax.f32 %v2171, %v2172
        %2174 = vmax.xlane.f32.xlu0 %v2173
        %v2175 = vpop.xlane.xlu0 %2174
        %v2176 = vsel %vm2069, %v1492, -inf
        %v2177 = vsel %vm2071, %v1670, -inf
        %v2178 = vmax.f32 %v2176, %v2177
        %2179 = vmax.xlane.f32.xlu0 %v2178
        %v2180 = vpop.xlane.xlu0 %2179
        %v2181 = vsel %vm2069, %v1495, -inf
        %v2182 = vsel %vm2071, %v1673, -inf
        %v2183 = vmax.f32 %v2181, %v2182
        %2184 = vmax.xlane.f32.xlu0 %v2183
        %v2185 = vpop.xlane.xlu0 %2184
        %v2186 = vsel %vm2069, %v1497, -inf
        %v2187 = vsel %vm2071, %v1675, -inf
        %v2188 = vmax.f32 %v2186, %v2187
        %2189 = vmax.xlane.f32.xlu0 %v2188
        %v2190 = vpop.xlane.xlu0 %2189
        %v2191 = vsel %vm2069, %v1500, -inf
        %v2192 = vsel %vm2071, %v1678, -inf
        %v2193 = vmax.f32 %v2191, %v2192
        %2194 = vmax.xlane.f32.xlu0 %v2193
        %v2195 = vpop.xlane.xlu0 %2194
        %v2196 = vsel %vm2069, %v1502, -inf
        %v2197 = vsel %vm2071, %v1680, -inf
        %v2198 = vmax.f32 %v2196, %v2197
        %2199 = vmax.xlane.f32.xlu0 %v2198
        %v2200 = vpop.xlane.xlu0 %2199
        %v2201 = vsel %vm2069, %v1505, -inf
        %v2202 = vsel %vm2071, %v1683, -inf
        %v2203 = vmax.f32 %v2201, %v2202
        %2204 = vmax.xlane.f32.xlu0 %v2203
        %v2205 = vpop.xlane.xlu0 %2204
        %v2206 = vsel %vm2069, %v1507, -inf
        %v2207 = vsel %vm2071, %v1685, -inf
        %v2208 = vmax.f32 %v2206, %v2207
        %2209 = vmax.xlane.f32.xlu0 %v2208
        %v2210 = vpop.xlane.xlu0 %2209
        %v2211 = vsel %vm2069, %v1510, -inf
        %v2212 = vsel %vm2071, %v1688, -inf
        %v2213 = vmax.f32 %v2211, %v2212
        %2214 = vmax.xlane.f32.xlu0 %v2213
        %v2215 = vpop.xlane.xlu0 %2214
        %v2216 = vsel %vm2069, %v1512, -inf
        %v2217 = vsel %vm2071, %v1690, -inf
        %v2218 = vmax.f32 %v2216, %v2217
        %2219 = vmax.xlane.f32.xlu0 %v2218
        %v2220 = vpop.xlane.xlu0 %2219
        %v2221 = vsel %vm2069, %v1515, -inf
        %v2222 = vsel %vm2071, %v1693, -inf
        %v2223 = vmax.f32 %v2221, %v2222
        %2224 = vmax.xlane.f32.xlu0 %v2223
        %v2225 = vpop.xlane.xlu0 %2224
        %v2226 = vsel %vm2069, %v1517, -inf
        %v2227 = vsel %vm2071, %v1695, -inf
        %v2228 = vmax.f32 %v2226, %v2227
        %2229 = vmax.xlane.f32.xlu0 %v2228
        %v2230 = vpop.xlane.xlu0 %2229
        %vm2231 = vcmask 670896
        %v2232 = vsel %vm2231, %v1618, -inf
        %2233 = vmax.xlane.f32.xlu0 %v2232
        %v2234 = vpop.xlane.xlu0 %2233
        %v2235 = vsel %vm2231, %v1620, -inf
        %2236 = vmax.xlane.f32.xlu0 %v2235
        %v2237 = vpop.xlane.xlu0 %2236
        %v2238 = vsel %vm2231, %v1623, -inf
        %2239 = vmax.xlane.f32.xlu0 %v2238
        %v2240 = vpop.xlane.xlu0 %2239
        %v2241 = vsel %vm2231, %v1625, -inf
        %2242 = vmax.xlane.f32.xlu0 %v2241
        %v2243 = vpop.xlane.xlu0 %2242
        %v2244 = vsel %vm2231, %v1628, -inf
        %2245 = vmax.xlane.f32.xlu0 %v2244
        %v2246 = vpop.xlane.xlu0 %2245
        %v2247 = vsel %vm2231, %v1630, -inf
        %2248 = vmax.xlane.f32.xlu0 %v2247
        %v2249 = vpop.xlane.xlu0 %2248
        %v2250 = vsel %vm2231, %v1633, -inf
        %2251 = vmax.xlane.f32.xlu0 %v2250
        %v2252 = vpop.xlane.xlu0 %2251
        %v2253 = vsel %vm2231, %v1635, -inf
        %2254 = vmax.xlane.f32.xlu0 %v2253
        %v2255 = vpop.xlane.xlu0 %2254
        %v2256 = vsel %vm2231, %v1638, -inf
        %2257 = vmax.xlane.f32.xlu0 %v2256
        %v2258 = vpop.xlane.xlu0 %2257
        %v2259 = vsel %vm2231, %v1640, -inf
        %2260 = vmax.xlane.f32.xlu0 %v2259
        %v2261 = vpop.xlane.xlu0 %2260
        %v2262 = vsel %vm2231, %v1643, -inf
        %2263 = vmax.xlane.f32.xlu0 %v2262
        %v2264 = vpop.xlane.xlu0 %2263
        %v2265 = vsel %vm2231, %v1645, -inf
        %2266 = vmax.xlane.f32.xlu0 %v2265
        %v2267 = vpop.xlane.xlu0 %2266
        %v2268 = vsel %vm2231, %v1648, -inf
        %2269 = vmax.xlane.f32.xlu0 %v2268
        %v2270 = vpop.xlane.xlu0 %2269
        %v2271 = vsel %vm2231, %v1650, -inf
        %2272 = vmax.xlane.f32.xlu0 %v2271
        %v2273 = vpop.xlane.xlu0 %2272
        %v2274 = vsel %vm2231, %v1653, -inf
        %2275 = vmax.xlane.f32.xlu0 %v2274
        %v2276 = vpop.xlane.xlu0 %2275
        %v2277 = vsel %vm2231, %v1655, -inf
        %2278 = vmax.xlane.f32.xlu0 %v2277
        %v2279 = vpop.xlane.xlu0 %2278
        %v2280 = vsel %vm2231, %v1658, -inf
        %2281 = vmax.xlane.f32.xlu0 %v2280
        %v2282 = vpop.xlane.xlu0 %2281
        %v2283 = vsel %vm2231, %v1660, -inf
        %2284 = vmax.xlane.f32.xlu0 %v2283
        %v2285 = vpop.xlane.xlu0 %2284
        %v2286 = vsel %vm2231, %v1663, -inf
        %2287 = vmax.xlane.f32.xlu0 %v2286
        %v2288 = vpop.xlane.xlu0 %2287
        %v2289 = vsel %vm2231, %v1665, -inf
        %2290 = vmax.xlane.f32.xlu0 %v2289
        %v2291 = vpop.xlane.xlu0 %2290
        %v2292 = vsel %vm2231, %v1668, -inf
        %2293 = vmax.xlane.f32.xlu0 %v2292
        %v2294 = vpop.xlane.xlu0 %2293
        %v2295 = vsel %vm2231, %v1670, -inf
        %2296 = vmax.xlane.f32.xlu0 %v2295
        %v2297 = vpop.xlane.xlu0 %2296
        %v2298 = vsel %vm2231, %v1673, -inf
        %2299 = vmax.xlane.f32.xlu0 %v2298
        %v2300 = vpop.xlane.xlu0 %2299
        %v2301 = vsel %vm2231, %v1675, -inf
        %2302 = vmax.xlane.f32.xlu0 %v2301
        %v2303 = vpop.xlane.xlu0 %2302
        %v2304 = vsel %vm2231, %v1678, -inf
        %2305 = vmax.xlane.f32.xlu0 %v2304
        %v2306 = vpop.xlane.xlu0 %2305
        %v2307 = vsel %vm2231, %v1680, -inf
        %2308 = vmax.xlane.f32.xlu0 %v2307
        %v2309 = vpop.xlane.xlu0 %2308
        %v2310 = vsel %vm2231, %v1683, -inf
        %2311 = vmax.xlane.f32.xlu0 %v2310
        %v2312 = vpop.xlane.xlu0 %2311
        %v2313 = vsel %vm2231, %v1685, -inf
        %2314 = vmax.xlane.f32.xlu0 %v2313
        %v2315 = vpop.xlane.xlu0 %2314
        %v2316 = vsel %vm2231, %v1688, -inf
        %2317 = vmax.xlane.f32.xlu0 %v2316
        %v2318 = vpop.xlane.xlu0 %2317
        %v2319 = vsel %vm2231, %v1690, -inf
        %2320 = vmax.xlane.f32.xlu0 %v2319
        %v2321 = vpop.xlane.xlu0 %2320
        %v2322 = vsel %vm2231, %v1693, -inf
        %2323 = vmax.xlane.f32.xlu0 %v2322
        %v2324 = vpop.xlane.xlu0 %2323
        %v2325 = vsel %vm2231, %v1695, -inf
        %2326 = vmax.xlane.f32.xlu0 %v2325
        %v2327 = vpop.xlane.xlu0 %2326
        %vm2328 = vcmask 1048208
        %v2329 = vsel %vm2328, %v1618, -inf
        %vm2330 = vcmask 31744
        %v2331 = vsel %vm2330, %v1796, -inf
        %v2332 = vmax.f32 %v2329, %v2331
        %2333 = vmax.xlane.f32.xlu0 %v2332
        %v2334 = vpop.xlane.xlu0 %2333
        %v2335 = vsel %vm2328, %v1620, -inf
        %v2336 = vsel %vm2330, %v1798, -inf
        %v2337 = vmax.f32 %v2335, %v2336
        %2338 = vmax.xlane.f32.xlu0 %v2337
        %v2339 = vpop.xlane.xlu0 %2338
        %v2340 = vsel %vm2328, %v1623, -inf
        %v2341 = vsel %vm2330, %v1801, -inf
        %v2342 = vmax.f32 %v2340, %v2341
        %2343 = vmax.xlane.f32.xlu0 %v2342
        %v2344 = vpop.xlane.xlu0 %2343
        %v2345 = vsel %vm2328, %v1625, -inf
        %v2346 = vsel %vm2330, %v1803, -inf
        %v2347 = vmax.f32 %v2345, %v2346
        %2348 = vmax.xlane.f32.xlu0 %v2347
        %v2349 = vpop.xlane.xlu0 %2348
        %v2350 = vsel %vm2328, %v1628, -inf
        %v2351 = vsel %vm2330, %v1806, -inf
        %v2352 = vmax.f32 %v2350, %v2351
        %2353 = vmax.xlane.f32.xlu0 %v2352
        %v2354 = vpop.xlane.xlu0 %2353
        %v2355 = vsel %vm2328, %v1630, -inf
        %v2356 = vsel %vm2330, %v1808, -inf
        %v2357 = vmax.f32 %v2355, %v2356
        %2358 = vmax.xlane.f32.xlu0 %v2357
        %v2359 = vpop.xlane.xlu0 %2358
        %v2360 = vsel %vm2328, %v1633, -inf
        %v2361 = vsel %vm2330, %v1811, -inf
        %v2362 = vmax.f32 %v2360, %v2361
        %2363 = vmax.xlane.f32.xlu0 %v2362
        %v2364 = vpop.xlane.xlu0 %2363
        %v2365 = vsel %vm2328, %v1635, -inf
        %v2366 = vsel %vm2330, %v1813, -inf
        %v2367 = vmax.f32 %v2365, %v2366
        %2368 = vmax.xlane.f32.xlu0 %v2367
        %v2369 = vpop.xlane.xlu0 %2368
        %v2370 = vsel %vm2328, %v1638, -inf
        %v2371 = vsel %vm2330, %v1816, -inf
        %v2372 = vmax.f32 %v2370, %v2371
        %2373 = vmax.xlane.f32.xlu0 %v2372
        %v2374 = vpop.xlane.xlu0 %2373
        %v2375 = vsel %vm2328, %v1640, -inf
        %v2376 = vsel %vm2330, %v1818, -inf
        %v2377 = vmax.f32 %v2375, %v2376
        %2378 = vmax.xlane.f32.xlu0 %v2377
        %v2379 = vpop.xlane.xlu0 %2378
        %v2380 = vsel %vm2328, %v1643, -inf
        %v2381 = vsel %vm2330, %v1821, -inf
        %v2382 = vmax.f32 %v2380, %v2381
        %2383 = vmax.xlane.f32.xlu0 %v2382
        %v2384 = vpop.xlane.xlu0 %2383
        %v2385 = vsel %vm2328, %v1645, -inf
        %v2386 = vsel %vm2330, %v1823, -inf
        %v2387 = vmax.f32 %v2385, %v2386
        %2388 = vmax.xlane.f32.xlu0 %v2387
        %v2389 = vpop.xlane.xlu0 %2388
        %v2390 = vsel %vm2328, %v1648, -inf
        %v2391 = vsel %vm2330, %v1826, -inf
        %v2392 = vmax.f32 %v2390, %v2391
        %2393 = vmax.xlane.f32.xlu0 %v2392
        %v2394 = vpop.xlane.xlu0 %2393
        %v2395 = vsel %vm2328, %v1650, -inf
        %v2396 = vsel %vm2330, %v1828, -inf
        %v2397 = vmax.f32 %v2395, %v2396
        %2398 = vmax.xlane.f32.xlu0 %v2397
        %v2399 = vpop.xlane.xlu0 %2398
        %v2400 = vsel %vm2328, %v1653, -inf
        %v2401 = vsel %vm2330, %v1831, -inf
        %v2402 = vmax.f32 %v2400, %v2401
        %2403 = vmax.xlane.f32.xlu0 %v2402
        %v2404 = vpop.xlane.xlu0 %2403
        %v2405 = vsel %vm2328, %v1655, -inf
        %v2406 = vsel %vm2330, %v1833, -inf
        %v2407 = vmax.f32 %v2405, %v2406
        %2408 = vmax.xlane.f32.xlu0 %v2407
        %v2409 = vpop.xlane.xlu0 %2408
        %v2410 = vsel %vm2328, %v1658, -inf
        %v2411 = vsel %vm2330, %v1836, -inf
        %v2412 = vmax.f32 %v2410, %v2411
        %2413 = vmax.xlane.f32.xlu0 %v2412
        %v2414 = vpop.xlane.xlu0 %2413
        %v2415 = vsel %vm2328, %v1660, -inf
        %v2416 = vsel %vm2330, %v1838, -inf
        %v2417 = vmax.f32 %v2415, %v2416
        %2418 = vmax.xlane.f32.xlu0 %v2417
        %v2419 = vpop.xlane.xlu0 %2418
        %v2420 = vsel %vm2328, %v1663, -inf
        %v2421 = vsel %vm2330, %v1841, -inf
        %v2422 = vmax.f32 %v2420, %v2421
        %2423 = vmax.xlane.f32.xlu0 %v2422
        %v2424 = vpop.xlane.xlu0 %2423
        %v2425 = vsel %vm2328, %v1665, -inf
        %v2426 = vsel %vm2330, %v1843, -inf
        %v2427 = vmax.f32 %v2425, %v2426
        %2428 = vmax.xlane.f32.xlu0 %v2427
        %v2429 = vpop.xlane.xlu0 %2428
        %v2430 = vsel %vm2328, %v1668, -inf
        %v2431 = vsel %vm2330, %v1846, -inf
        %v2432 = vmax.f32 %v2430, %v2431
        %2433 = vmax.xlane.f32.xlu0 %v2432
        %v2434 = vpop.xlane.xlu0 %2433
        %v2435 = vsel %vm2328, %v1670, -inf
        %v2436 = vsel %vm2330, %v1848, -inf
        %v2437 = vmax.f32 %v2435, %v2436
        %2438 = vmax.xlane.f32.xlu0 %v2437
        %v2439 = vpop.xlane.xlu0 %2438
        %v2440 = vsel %vm2328, %v1673, -inf
        %v2441 = vsel %vm2330, %v1851, -inf
        %v2442 = vmax.f32 %v2440, %v2441
        %2443 = vmax.xlane.f32.xlu0 %v2442
        %v2444 = vpop.xlane.xlu0 %2443
        %v2445 = vsel %vm2328, %v1675, -inf
        %v2446 = vsel %vm2330, %v1853, -inf
        %v2447 = vmax.f32 %v2445, %v2446
        %2448 = vmax.xlane.f32.xlu0 %v2447
        %v2449 = vpop.xlane.xlu0 %2448
        %v2450 = vsel %vm2328, %v1678, -inf
        %v2451 = vsel %vm2330, %v1856, -inf
        %v2452 = vmax.f32 %v2450, %v2451
        %2453 = vmax.xlane.f32.xlu0 %v2452
        %v2454 = vpop.xlane.xlu0 %2453
        %v2455 = vsel %vm2328, %v1680, -inf
        %v2456 = vsel %vm2330, %v1858, -inf
        %v2457 = vmax.f32 %v2455, %v2456
        %2458 = vmax.xlane.f32.xlu0 %v2457
        %v2459 = vpop.xlane.xlu0 %2458
        %v2460 = vsel %vm2328, %v1683, -inf
        %v2461 = vsel %vm2330, %v1861, -inf
        %v2462 = vmax.f32 %v2460, %v2461
        %2463 = vmax.xlane.f32.xlu0 %v2462
        %v2464 = vpop.xlane.xlu0 %2463
        %v2465 = vsel %vm2328, %v1685, -inf
        %v2466 = vsel %vm2330, %v1863, -inf
        %v2467 = vmax.f32 %v2465, %v2466
        %2468 = vmax.xlane.f32.xlu0 %v2467
        %v2469 = vpop.xlane.xlu0 %2468
        %v2470 = vsel %vm2328, %v1688, -inf
        %v2471 = vsel %vm2330, %v1866, -inf
        %v2472 = vmax.f32 %v2470, %v2471
        %2473 = vmax.xlane.f32.xlu0 %v2472
        %v2474 = vpop.xlane.xlu0 %2473
        %v2475 = vsel %vm2328, %v1690, -inf
        %v2476 = vsel %vm2330, %v1868, -inf
        %v2477 = vmax.f32 %v2475, %v2476
        %2478 = vmax.xlane.f32.xlu0 %v2477
        %v2479 = vpop.xlane.xlu0 %2478
        %v2480 = vsel %vm2328, %v1693, -inf
        %v2481 = vsel %vm2330, %v1871, -inf
        %v2482 = vmax.f32 %v2480, %v2481
        %2483 = vmax.xlane.f32.xlu0 %v2482
        %v2484 = vpop.xlane.xlu0 %2483
        %v2485 = vsel %vm2328, %v1695, -inf
        %v2486 = vsel %vm2330, %v1873, -inf
        %v2487 = vmax.f32 %v2485, %v2486
        %2488 = vmax.xlane.f32.xlu0 %v2487
        %v2489 = vpop.xlane.xlu0 %2488
        %vm2490 = vcmask 605216
        %v2491 = vsel %vm2490, %v1796, -inf
        %2492 = vmax.xlane.f32.xlu0 %v2491
        %v2493 = vpop.xlane.xlu0 %2492
        %v2494 = vsel %vm2490, %v1798, -inf
        %2495 = vmax.xlane.f32.xlu0 %v2494
        %v2496 = vpop.xlane.xlu0 %2495
        %v2497 = vsel %vm2490, %v1801, -inf
        %2498 = vmax.xlane.f32.xlu0 %v2497
        %v2499 = vpop.xlane.xlu0 %2498
        %v2500 = vsel %vm2490, %v1803, -inf
        %2501 = vmax.xlane.f32.xlu0 %v2500
        %v2502 = vpop.xlane.xlu0 %2501
        %v2503 = vsel %vm2490, %v1806, -inf
        %2504 = vmax.xlane.f32.xlu0 %v2503
        %v2505 = vpop.xlane.xlu0 %2504
        %v2506 = vsel %vm2490, %v1808, -inf
        %2507 = vmax.xlane.f32.xlu0 %v2506
        %v2508 = vpop.xlane.xlu0 %2507
        %v2509 = vsel %vm2490, %v1811, -inf
        %2510 = vmax.xlane.f32.xlu0 %v2509
        %v2511 = vpop.xlane.xlu0 %2510
        %v2512 = vsel %vm2490, %v1813, -inf
        %2513 = vmax.xlane.f32.xlu0 %v2512
        %v2514 = vpop.xlane.xlu0 %2513
        %v2515 = vsel %vm2490, %v1816, -inf
        %2516 = vmax.xlane.f32.xlu0 %v2515
        %v2517 = vpop.xlane.xlu0 %2516
        %v2518 = vsel %vm2490, %v1818, -inf
        %2519 = vmax.xlane.f32.xlu0 %v2518
        %v2520 = vpop.xlane.xlu0 %2519
        %v2521 = vsel %vm2490, %v1821, -inf
        %2522 = vmax.xlane.f32.xlu0 %v2521
        %v2523 = vpop.xlane.xlu0 %2522
        %v2524 = vsel %vm2490, %v1823, -inf
        %2525 = vmax.xlane.f32.xlu0 %v2524
        %v2526 = vpop.xlane.xlu0 %2525
        %v2527 = vsel %vm2490, %v1826, -inf
        %2528 = vmax.xlane.f32.xlu0 %v2527
        %v2529 = vpop.xlane.xlu0 %2528
        %v2530 = vsel %vm2490, %v1828, -inf
        %2531 = vmax.xlane.f32.xlu0 %v2530
        %v2532 = vpop.xlane.xlu0 %2531
        %v2533 = vsel %vm2490, %v1831, -inf
        %2534 = vmax.xlane.f32.xlu0 %v2533
        %v2535 = vpop.xlane.xlu0 %2534
        %v2536 = vsel %vm2490, %v1833, -inf
        %2537 = vmax.xlane.f32.xlu0 %v2536
        %v2538 = vpop.xlane.xlu0 %2537
        %v2539 = vsel %vm2490, %v1836, -inf
        %2540 = vmax.xlane.f32.xlu0 %v2539
        %v2541 = vpop.xlane.xlu0 %2540
        %v2542 = vsel %vm2490, %v1838, -inf
        %2543 = vmax.xlane.f32.xlu0 %v2542
        %v2544 = vpop.xlane.xlu0 %2543
        %v2545 = vsel %vm2490, %v1841, -inf
        %2546 = vmax.xlane.f32.xlu0 %v2545
        %v2547 = vpop.xlane.xlu0 %2546
        %v2548 = vsel %vm2490, %v1843, -inf
        %2549 = vmax.xlane.f32.xlu0 %v2548
        %v2550 = vpop.xlane.xlu0 %2549
        %v2551 = vsel %vm2490, %v1846, -inf
        %2552 = vmax.xlane.f32.xlu0 %v2551
        %v2553 = vpop.xlane.xlu0 %2552
        %v2554 = vsel %vm2490, %v1848, -inf
        %2555 = vmax.xlane.f32.xlu0 %v2554
        %v2556 = vpop.xlane.xlu0 %2555
        %v2557 = vsel %vm2490, %v1851, -inf
        %2558 = vmax.xlane.f32.xlu0 %v2557
        %v2559 = vpop.xlane.xlu0 %2558
        %v2560 = vsel %vm2490, %v1853, -inf
        %2561 = vmax.xlane.f32.xlu0 %v2560
        %v2562 = vpop.xlane.xlu0 %2561
        %v2563 = vsel %vm2490, %v1856, -inf
        %2564 = vmax.xlane.f32.xlu0 %v2563
        %v2565 = vpop.xlane.xlu0 %2564
        %v2566 = vsel %vm2490, %v1858, -inf
        %2567 = vmax.xlane.f32.xlu0 %v2566
        %v2568 = vpop.xlane.xlu0 %2567
        %v2569 = vsel %vm2490, %v1861, -inf
        %2570 = vmax.xlane.f32.xlu0 %v2569
        %v2571 = vpop.xlane.xlu0 %2570
        %v2572 = vsel %vm2490, %v1863, -inf
        %2573 = vmax.xlane.f32.xlu0 %v2572
        %v2574 = vpop.xlane.xlu0 %2573
        %v2575 = vsel %vm2490, %v1866, -inf
        %2576 = vmax.xlane.f32.xlu0 %v2575
        %v2577 = vpop.xlane.xlu0 %2576
        %v2578 = vsel %vm2490, %v1868, -inf
        %2579 = vmax.xlane.f32.xlu0 %v2578
        %v2580 = vpop.xlane.xlu0 %2579
        %v2581 = vsel %vm2490, %v1871, -inf
        %2582 = vmax.xlane.f32.xlu0 %v2581
        %v2583 = vpop.xlane.xlu0 %2582
        %v2584 = vsel %vm2490, %v1873, -inf
        %2585 = vmax.xlane.f32.xlu0 %v2584
        %v2586 = vpop.xlane.xlu0 %2585
        %vm2587 = vcmask 7168
        %v2588 = vsel %vm2587, %v1878, %v1975
        %v2589 = vsel %vm2587, %v1881, %v1978
        %v2590 = vsel %vm2587, %v1884, %v1981
        %v2591 = vsel %vm2587, %v1887, %v1984
        %v2592 = vsel %vm2587, %v1890, %v1987
        %v2593 = vsel %vm2587, %v1893, %v1990
        %v2594 = vsel %vm2587, %v1896, %v1993
        %v2595 = vsel %vm2587, %v1899, %v1996
        %v2596 = vsel %vm2587, %v1902, %v1999
        %v2597 = vsel %vm2587, %v1905, %v2002
        %v2598 = vsel %vm2587, %v1908, %v2005
        %v2599 = vsel %vm2587, %v1911, %v2008
        %v2600 = vsel %vm2587, %v1914, %v2011
        %v2601 = vsel %vm2587, %v1917, %v2014
        %v2602 = vsel %vm2587, %v1920, %v2017
        %v2603 = vsel %vm2587, %v1923, %v2020
        %v2604 = vsel %vm2587, %v1926, %v2023
        %v2605 = vsel %vm2587, %v1929, %v2026
        %v2606 = vsel %vm2587, %v1932, %v2029
        %v2607 = vsel %vm2587, %v1935, %v2032
        %v2608 = vsel %vm2587, %v1938, %v2035
        %v2609 = vsel %vm2587, %v1941, %v2038
        %v2610 = vsel %vm2587, %v1944, %v2041
        %v2611 = vsel %vm2587, %v1947, %v2044
        %v2612 = vsel %vm2587, %v1950, %v2047
        %v2613 = vsel %vm2587, %v1953, %v2050
        %v2614 = vsel %vm2587, %v1956, %v2053
        %v2615 = vsel %vm2587, %v1959, %v2056
        %v2616 = vsel %vm2587, %v1962, %v2059
        %v2617 = vsel %vm2587, %v1965, %v2062
        %v2618 = vsel %vm2587, %v1968, %v2065
        %v2619 = vsel %vm2587, %v1971, %v2068
        %vm2620 = vcmask 15360
        %v2621 = vsel %vm2620, %v2588, %v2075
        %v2622 = vsel %vm2620, %v2589, %v2080
        %v2623 = vsel %vm2620, %v2590, %v2085
        %v2624 = vsel %vm2620, %v2591, %v2090
        %v2625 = vsel %vm2620, %v2592, %v2095
        %v2626 = vsel %vm2620, %v2593, %v2100
        %v2627 = vsel %vm2620, %v2594, %v2105
        %v2628 = vsel %vm2620, %v2595, %v2110
        %v2629 = vsel %vm2620, %v2596, %v2115
        %v2630 = vsel %vm2620, %v2597, %v2120
        %v2631 = vsel %vm2620, %v2598, %v2125
        %v2632 = vsel %vm2620, %v2599, %v2130
        %v2633 = vsel %vm2620, %v2600, %v2135
        %v2634 = vsel %vm2620, %v2601, %v2140
        %v2635 = vsel %vm2620, %v2602, %v2145
        %v2636 = vsel %vm2620, %v2603, %v2150
        %v2637 = vsel %vm2620, %v2604, %v2155
        %v2638 = vsel %vm2620, %v2605, %v2160
        %v2639 = vsel %vm2620, %v2606, %v2165
        %v2640 = vsel %vm2620, %v2607, %v2170
        %v2641 = vsel %vm2620, %v2608, %v2175
        %v2642 = vsel %vm2620, %v2609, %v2180
        %v2643 = vsel %vm2620, %v2610, %v2185
        %v2644 = vsel %vm2620, %v2611, %v2190
        %v2645 = vsel %vm2620, %v2612, %v2195
        %v2646 = vsel %vm2620, %v2613, %v2200
        %v2647 = vsel %vm2620, %v2614, %v2205
        %v2648 = vsel %vm2620, %v2615, %v2210
        %v2649 = vsel %vm2620, %v2616, %v2215
        %v2650 = vsel %vm2620, %v2617, %v2220
        %v2651 = vsel %vm2620, %v2618, %v2225
        %v2652 = vsel %vm2620, %v2619, %v2230
        %vm2653 = vcmask 23552
        %v2654 = vsel %vm2653, %v2621, %v2234
        %v2655 = vsel %vm2653, %v2622, %v2237
        %v2656 = vsel %vm2653, %v2623, %v2240
        %v2657 = vsel %vm2653, %v2624, %v2243
        %v2658 = vsel %vm2653, %v2625, %v2246
        %v2659 = vsel %vm2653, %v2626, %v2249
        %v2660 = vsel %vm2653, %v2627, %v2252
        %v2661 = vsel %vm2653, %v2628, %v2255
        %v2662 = vsel %vm2653, %v2629, %v2258
        %v2663 = vsel %vm2653, %v2630, %v2261
        %v2664 = vsel %vm2653, %v2631, %v2264
        %v2665 = vsel %vm2653, %v2632, %v2267
        %v2666 = vsel %vm2653, %v2633, %v2270
        %v2667 = vsel %vm2653, %v2634, %v2273
        %v2668 = vsel %vm2653, %v2635, %v2276
        %v2669 = vsel %vm2653, %v2636, %v2279
        %v2670 = vsel %vm2653, %v2637, %v2282
        %v2671 = vsel %vm2653, %v2638, %v2285
        %v2672 = vsel %vm2653, %v2639, %v2288
        %v2673 = vsel %vm2653, %v2640, %v2291
        %v2674 = vsel %vm2653, %v2641, %v2294
        %v2675 = vsel %vm2653, %v2642, %v2297
        %v2676 = vsel %vm2653, %v2643, %v2300
        %v2677 = vsel %vm2653, %v2644, %v2303
        %v2678 = vsel %vm2653, %v2645, %v2306
        %v2679 = vsel %vm2653, %v2646, %v2309
        %v2680 = vsel %vm2653, %v2647, %v2312
        %v2681 = vsel %vm2653, %v2648, %v2315
        %v2682 = vsel %vm2653, %v2649, %v2318
        %v2683 = vsel %vm2653, %v2650, %v2321
        %v2684 = vsel %vm2653, %v2651, %v2324
        %v2685 = vsel %vm2653, %v2652, %v2327
        %v2686 = vsel %vm2330, %v2654, %v2334
        %v2687 = vsel %vm2330, %v2655, %v2339
        %v2688 = vsel %vm2330, %v2656, %v2344
        %v2689 = vsel %vm2330, %v2657, %v2349
        %v2690 = vsel %vm2330, %v2658, %v2354
        %v2691 = vsel %vm2330, %v2659, %v2359
        %v2692 = vsel %vm2330, %v2660, %v2364
        %v2693 = vsel %vm2330, %v2661, %v2369
        %v2694 = vsel %vm2330, %v2662, %v2374
        %v2695 = vsel %vm2330, %v2663, %v2379
        %v2696 = vsel %vm2330, %v2664, %v2384
        %v2697 = vsel %vm2330, %v2665, %v2389
        %v2698 = vsel %vm2330, %v2666, %v2394
        %v2699 = vsel %vm2330, %v2667, %v2399
        %v2700 = vsel %vm2330, %v2668, %v2404
        %v2701 = vsel %vm2330, %v2669, %v2409
        %v2702 = vsel %vm2330, %v2670, %v2414
        %v2703 = vsel %vm2330, %v2671, %v2419
        %v2704 = vsel %vm2330, %v2672, %v2424
        %v2705 = vsel %vm2330, %v2673, %v2429
        %v2706 = vsel %vm2330, %v2674, %v2434
        %v2707 = vsel %vm2330, %v2675, %v2439
        %v2708 = vsel %vm2330, %v2676, %v2444
        %v2709 = vsel %vm2330, %v2677, %v2449
        %v2710 = vsel %vm2330, %v2678, %v2454
        %v2711 = vsel %vm2330, %v2679, %v2459
        %v2712 = vsel %vm2330, %v2680, %v2464
        %v2713 = vsel %vm2330, %v2681, %v2469
        %v2714 = vsel %vm2330, %v2682, %v2474
        %v2715 = vsel %vm2330, %v2683, %v2479
        %v2716 = vsel %vm2330, %v2684, %v2484
        %v2717 = vsel %vm2330, %v2685, %v2489
        %vm2718 = vcmask 39936
        %v2719 = vsel %vm2718, %v2686, %v2493
        %v2720 = vsel %vm2718, %v2687, %v2496
        %v2721 = vsel %vm2718, %v2688, %v2499
        %v2722 = vsel %vm2718, %v2689, %v2502
        %v2723 = vsel %vm2718, %v2690, %v2505
        %v2724 = vsel %vm2718, %v2691, %v2508
        %v2725 = vsel %vm2718, %v2692, %v2511
        %v2726 = vsel %vm2718, %v2693, %v2514
        %v2727 = vsel %vm2718, %v2694, %v2517
        %v2728 = vsel %vm2718, %v2695, %v2520
        %v2729 = vsel %vm2718, %v2696, %v2523
        %v2730 = vsel %vm2718, %v2697, %v2526
        %v2731 = vsel %vm2718, %v2698, %v2529
        %v2732 = vsel %vm2718, %v2699, %v2532
        %v2733 = vsel %vm2718, %v2700, %v2535
        %v2734 = vsel %vm2718, %v2701, %v2538
        %v2735 = vsel %vm2718, %v2702, %v2541
        %v2736 = vsel %vm2718, %v2703, %v2544
        %v2737 = vsel %vm2718, %v2704, %v2547
        %v2738 = vsel %vm2718, %v2705, %v2550
        %v2739 = vsel %vm2718, %v2706, %v2553
        %v2740 = vsel %vm2718, %v2707, %v2556
        %v2741 = vsel %vm2718, %v2708, %v2559
        %v2742 = vsel %vm2718, %v2709, %v2562
        %v2743 = vsel %vm2718, %v2710, %v2565
        %v2744 = vsel %vm2718, %v2711, %v2568
        %v2745 = vsel %vm2718, %v2712, %v2571
        %v2746 = vsel %vm2718, %v2713, %v2574
        %v2747 = vsel %vm2718, %v2714, %v2577
        %v2748 = vsel %vm2718, %v2715, %v2580
        %v2749 = vsel %vm2718, %v2716, %v2583
        %v2750 = vsel %vm2718, %v2717, %v2586
        %vm2751 = vcmask 48128
        %v2752 = vsel %vm2751, %v2719, 0.0
        %v2753 = vsel %vm2751, %v2720, 0.0
        %v2754 = vsel %vm2751, %v2721, 0.0
        %v2755 = vsel %vm2751, %v2722, 0.0
        %v2756 = vsel %vm2751, %v2723, 0.0
        %v2757 = vsel %vm2751, %v2724, 0.0
        %v2758 = vsel %vm2751, %v2725, 0.0
        %v2759 = vsel %vm2751, %v2726, 0.0
        %v2760 = vsel %vm2751, %v2727, 0.0
        %v2761 = vsel %vm2751, %v2728, 0.0
        %v2762 = vsel %vm2751, %v2729, 0.0
        %v2763 = vsel %vm2751, %v2730, 0.0
        %v2764 = vsel %vm2751, %v2731, 0.0
        %v2765 = vsel %vm2751, %v2732, 0.0
        %v2766 = vsel %vm2751, %v2733, 0.0
        %v2767 = vsel %vm2751, %v2734, 0.0
        %v2768 = vsel %vm2751, %v2735, 0.0
        %v2769 = vsel %vm2751, %v2736, 0.0
        %v2770 = vsel %vm2751, %v2737, 0.0
        %v2771 = vsel %vm2751, %v2738, 0.0
        %v2772 = vsel %vm2751, %v2739, 0.0
        %v2773 = vsel %vm2751, %v2740, 0.0
        %v2774 = vsel %vm2751, %v2741, 0.0
        %v2775 = vsel %vm2751, %v2742, 0.0
        %v2776 = vsel %vm2751, %v2743, 0.0
        %v2777 = vsel %vm2751, %v2744, 0.0
        %v2778 = vsel %vm2751, %v2745, 0.0
        %v2779 = vsel %vm2751, %v2746, 0.0
        %v2780 = vsel %vm2751, %v2747, 0.0
        %v2781 = vsel %vm2751, %v2748, 0.0
        %v2782 = vsel %vm2751, %v2749, 0.0
        %v2783 = vsel %vm2751, %v2750, 0.0
        %2784 = vst [vmem:[%s246] sm:$0xff] %v2752
        %2785 = vst [vmem:[%s246 + $0x8] sm:$0xff] %v2753
        %2786 = vst [vmem:[%s246 + $0x10] sm:$0xff] %v2754
        %2787 = vst [vmem:[%s246 + $0x18] sm:$0xff] %v2755
        %2788 = vst [vmem:[%s246 + $0x20] sm:$0xff] %v2756
        %2789 = vst [vmem:[%s246 + $0x28] sm:$0xff] %v2757
        %2790 = vst [vmem:[%s246 + $0x30] sm:$0xff] %v2758
        %2791 = vst [vmem:[%s246 + $0x38] sm:$0xff] %v2759
        %2792 = vst [vmem:[%s246 + $0x40] sm:$0xff] %v2760
        %2793 = vst [vmem:[%s246 + $0x48] sm:$0xff] %v2761
        %2794 = vst [vmem:[%s246 + $0x50] sm:$0xff] %v2762
        %2795 = vst [vmem:[%s246 + $0x58] sm:$0xff] %v2763
        %2796 = vst [vmem:[%s246 + $0x60] sm:$0xff] %v2764
        %2797 = vst [vmem:[%s246 + $0x68] sm:$0xff] %v2765
        %2798 = vst [vmem:[%s246 + $0x70] sm:$0xff] %v2766
        %2799 = vst [vmem:[%s246 + $0x78] sm:$0xff] %v2767
        %2800 = vst [vmem:[%s246 + $0x80] sm:$0xff] %v2768
        %2801 = vst [vmem:[%s246 + $0x88] sm:$0xff] %v2769
        %2802 = vst [vmem:[%s246 + $0x90] sm:$0xff] %v2770
        %2803 = vst [vmem:[%s246 + $0x98] sm:$0xff] %v2771
        %2804 = vst [vmem:[%s246 + $0xa0] sm:$0xff] %v2772
        %2805 = vst [vmem:[%s246 + $0xa8] sm:$0xff] %v2773
        %2806 = vst [vmem:[%s246 + $0xb0] sm:$0xff] %v2774
        %2807 = vst [vmem:[%s246 + $0xb8] sm:$0xff] %v2775
        %2808 = vst [vmem:[%s246 + $0xc0] sm:$0xff] %v2776
        %2809 = vst [vmem:[%s246 + $0xc8] sm:$0xff] %v2777
        %2810 = vst [vmem:[%s246 + $0xd0] sm:$0xff] %v2778
        %2811 = vst [vmem:[%s246 + $0xd8] sm:$0xff] %v2779
        %2812 = vst [vmem:[%s246 + $0xe0] sm:$0xff] %v2780
        %2813 = vst [vmem:[%s246 + $0xe8] sm:$0xff] %v2781
        %2814 = vst [vmem:[%s246 + $0xf0] sm:$0xff] %v2782
        %2815 = vst [vmem:[%s246 + $0xf8] sm:$0xff] %v2783
        %s2816 = sand.u32 %s116, 1
        %s2817 = scalar_lea.sflag [#allocation4], %s2816
        %s2818 = sand.u32 %s116, 1
        %s2819 = smul.addr %s2818, 256
        %s2820 = scalar_lea.vmem [#allocation8], %s2819
        // Predicated region
        $region45: #{tpu_custom_call.1} parent=31 // pred_check
          %p2821 = pneg %p126
        $region46: #{tpu_custom_call.1} parent=31 // pred_check_branch
          %2823 = sbr.rel (%p2821) target = $region48
        $region47: #{tpu_custom_call.1} parent=31 // pred_region
          %s2824 = smul.u32 32, %s26
          %2826 = vsyncadd %s2817, 0
          %s2827 = smul.addr %s25, 32
          %s2828 = sadd.s32 %s2824, %s2827
          %s2829 = smul.addr %s2828, 8
          %s2830 = scalar_lea.hbm %s3, %s2829
          %s2831 = sshll.u32 %s2820, 4
          %s2832 = int_to_ptr.vmem [resolvable:$true] %s2831
          %s2833 = sshll.u32 %s2830, 4
          %s2834 = int_to_ptr.hbm [resolvable:$true] %s2833
          %2839 = dma.vmem_to_hbm [thread:$0]  %s2832, 4096, %s2834, %s2817, 128, 128, 8
        $region48: #{tpu_custom_call.1} parent=31 // pred_fallthru
          _
      $region32: #{tpu_custom_call.1} parent=5 // pred_fallthru
        _
      %p2840 = scmp.le.s32.totalorder 2, %s16
      // Predicated region
      $region49: #{tpu_custom_call.1} parent=5 // pred_check
        %p2841 = pneg %p2840
      $region50: #{tpu_custom_call.1} parent=5 // pred_check_branch
        %2843 = sbr.rel (%p2841) target = $region52
      $region51: #{tpu_custom_call.1} parent=5 // pred_region
        %s2844 = ssub.s32 %s16, 2
        // Predicated region
        $region53: #{tpu_custom_call.1} parent=51 // pred_check
          %p2845 = pneg %p132
        $region54: #{tpu_custom_call.1} parent=51 // pred_check_branch
          %2847 = sbr.rel (%p2845) target = $region56
        $region55: #{tpu_custom_call.1} parent=51 // pred_region
          %s2848 = sand.u32 %s117, 1
          %s2849 = scalar_lea.sflag [#allocation4], %s2848
          %s2850 = sand.u32 %s117, 1
          %s2851 = smul.addr %s2850, 256
          %s2852 = scalar_lea.vmem [#allocation8], %s2851
          %2854 = dma.done %s2849, 4096
        $region56: #{tpu_custom_call.1} parent=51 // pred_fallthru
          _
      $region52: #{tpu_custom_call.1} parent=5 // pred_fallthru
        _
    $region6: #{tpu_custom_call.1} parent=1 // loop_footer
      %s20 = sadd.s32 1, %s16
    $region7: #{tpu_custom_call.1} parent=1 // loop_footer_branch
      %15 = sbr.rel target = $region3
    $region8: #{tpu_custom_call.1} parent=1 // loop_exit
      _
    %2855 = vsyncpa [#allocation3], 1
    %s2856 = scalar_lea.sflag [#allocation3], 1
    %2857 = vsyncpa %s2856, 1
    %2858 = vsyncpa [#allocation6], 1
    %s2859 = scalar_lea.sflag [#allocation6], 1
    %2860 = vsyncpa %s2859, 1
    %2861 = vsyncpa [#allocation4], 1
    %s2862 = scalar_lea.sflag [#allocation4], 1
    %2863 = vsyncpa %s2862, 1

</llo_original>
